<compile_context>
chip_gen: v6e
topology: v6e:2x2x1
jax: 0.10.0
libtpu: 0.0.40
codegen_flags: <defaults>
</compile_context>

<pallas_src>
import functools
import math

import jax
import jax.numpy as jnp
from jax import lax
from jax.experimental import pallas as pl
from jax.experimental.pallas import tpu as pltpu


def _round_up(n, m):
    return ((n + m - 1) // m) * m


def _tensorcores_per_device():
    """Best-effort TensorCore count per device (v7x / megacore -> 2). Defaults to 1."""
    try:
        dev = jax.devices()[0]
        for attr in ("num_cores", "core_count"):
            v = getattr(dev, attr, None)
            if isinstance(v, int) and v >= 1:
                return min(int(v), 2)
    except Exception:
        pass
    return 1


def _vmem_capacity_bytes():
    try:
        return int(pltpu.get_tpu_info().vmem_capacity_bytes)
    except Exception:
        return 64 * 1024 * 1024          # v7x per-TC floor: safe everywhere


def _phase_gru_kernel(x_ref, wih_ref, whh_ref, gib_ref, bhn_ref, wc_ref, bc_ref,
                      out_ref, h_ref, gi_scr, hs_scr):
    """One (batch-shard, time-chunk) grid step.

    x_ref   : (Tc, Bs, D)      input chunk, time-major            (compute dtype)
    wih_ref : (D,  3*Hp)       W_ih^T, gate blocks lane-padded    (compute dtype)
    whh_ref : (Hp, 3*Hp)       W_hh^T, lane/sublane zero-padded   (compute dtype)
    gib_ref : (1,  3*Hp) f32   b_ih + [b_hr, b_hz, 0], lane-padded
    bhn_ref : (1,  Hp)   f32   b_hn, lane-padded
    wc_ref  : (Hp, Cp)         classifier W^T, zero-padded        (compute dtype)
    bc_ref  : (1,  Cp)   f32   classifier bias, padded
    out_ref : (Tc, Bs, Cp)     logits for this chunk (lane-dense)
    h_ref   : (Bs, Hp)   f32   hidden-state carry, persists across time chunks
    gi_scr  : (Tc, Bs, 3*Hp) f32  precomputed input projections
    hs_scr  : (Tc, Bs, Hp)   f32  hidden states of this chunk
    """
    t_chunk = pl.program_id(1)

    @pl.when(t_chunk == 0)
    def _():
        h_ref[...] = jnp.zeros_like(h_ref)

    Tc, Bs, D = x_ref.shape
    Hp = whh_ref.shape[0]
    Cp = out_ref.shape[-1]
    cdt = whh_ref.dtype

    # ---- 1) Input projection for the whole chunk: one batched MXU matmul -----
    x_all = x_ref[...].reshape(Tc * Bs, D)
    gi = jnp.dot(x_all, wih_ref[...], preferred_element_type=jnp.float32)
    gi_scr[...] = (gi + gib_ref[...]).reshape(Tc, Bs, 3 * Hp)

    # ---- 2) Serial recurrence: only h @ W_hh^T + gate math per step ----------
    whh = whh_ref[...]                       # hoisted, loaded once
    b_hn = bhn_ref[...]

    def step(t, h_prev):
        gi_t = gi_scr[t]                                                  # (Bs, 3*Hp) f32
        gh = jnp.dot(h_prev.astype(cdt), whh,
                     preferred_element_type=jnp.float32)                  # (Bs, 3*Hp) f32
        # Gate slices are 128-lane aligned (Hp % 128 == 0): no XLU lane shuffles.
        r = jax.nn.sigmoid(gi_t[:, 0 * Hp:1 * Hp] + gh[:, 0 * Hp:1 * Hp])
        z = jax.nn.sigmoid(gi_t[:, 1 * Hp:2 * Hp] + gh[:, 1 * Hp:2 * Hp])
        n = jnp.tanh(gi_t[:, 2 * Hp:3 * Hp] + r * (gh[:, 2 * Hp:3 * Hp] + b_hn))
        h_new = n + z * (h_prev - n)                                      # == (1-z)*n + z*h
        hs_scr[t] = h_new
        return h_new

    unroll = Tc if Tc <= 8 else 4            # full unroll for short chunks, partial otherwise
    h_last = lax.fori_loop(0, Tc, step, h_ref[...], unroll=unroll)
    h_ref[...] = h_last                      # carry into the next time chunk

    # ---- 3) Batched, lane-dense classifier for this chunk --------------------
    hs = hs_scr[...].reshape(Tc * Bs, Hp).astype(cdt)
    logits = jnp.dot(hs, wc_ref[...], preferred_element_type=jnp.float32) + bc_ref[...]
    out_ref[...] = logits.reshape(Tc, Bs, Cp).astype(out_ref.dtype)


@functools.partial(jax.jit, static_argnames=("compute_dtype",))
def phase_gru_forward(x, params, compute_dtype=jnp.float32):
    """x: (B, T, D) float32 (PyTorch batch_first). Returns (B, T, C) float32."""
    w_ih, w_hh, b_ih, b_hh, w_c, b_c = (
        params["w_ih"], params["w_hh"], params["b_ih"],
        params["b_hh"], params["w_c"], params["b_c"])

    B, T, D = x.shape
    H = w_hh.shape[1]                  # w_hh: (3H, H)
    C = w_c.shape[0]                   # w_c : (C, H)

    Hp = _round_up(H, 128)             # each gate in its own lane-aligned block
    Cp = _round_up(C, 128)             # lane-dense output stores
    cdt = compute_dtype
    f32 = jnp.float32
    cbytes = jnp.dtype(cdt).itemsize

    # --- batch layout: pad to sublanes; shard across TensorCores when useful --
    n_tc = _tensorcores_per_device()
    if n_tc > 1 and B >= 16:
        NB = n_tc
        Bp = _round_up(B, 16 * NB)     # each shard a multiple of 16 sublanes
    else:
        NB = 1
        Bp = _round_up(max(B, 8), 8)
    # NOTE: for real workloads, size the batch toward 128-256 rows so the serial
    # per-step (Bs, Hp) @ (Hp, 3*Hp) matmul fills the MXU systolic rows.
    Bs = Bp // NB

    # --- time-chunk size + VMEM limit derived from the chip's VMEM capacity ---
    cap = _vmem_capacity_bytes()
    budget = (cap * 3) // 4
    fixed = (2 * cbytes * (D * 3 * Hp + Hp * 3 * Hp + Hp * Cp)   # weights (double-buffered)
             + 2 * 4 * (3 * Hp + Hp + Cp)                        # biases
             + 4 * Bs * Hp)                                      # h carry
    per_t = Bs * (2 * cbytes * D       # x chunk (double-buffered)
                  + 2 * cbytes * Cp    # out chunk (double-buffered)
                  + 4 * 3 * Hp         # gi scratch (f32)
                  + 4 * Hp)            # hs scratch (f32)
    Tc = int(max(1, min(T, (budget - fixed) // max(per_t, 1))))
    if Tc >= 8:
        Tc = (Tc // 8) * 8
    Tp = _round_up(T, Tc)
    NT = Tp // Tc
    vmem_limit = int(min(cap, max(fixed + per_t * Tc + (8 << 20), 32 << 20)))

    # Time-major + batch/time zero-pad, fused into one copy (no standalone transpose op).
    x_tm = jnp.zeros((Tp, Bp, D), cdt)
    x_tm = x_tm.at[:T, :B, :].set(jnp.swapaxes(x, 0, 1).astype(cdt))

    # Gate-lane-padded, pre-transposed weights: gate g lives at lanes [g*Hp, g*Hp + H).
    wih_t = jnp.zeros((D, 3 * Hp), cdt)
    whh_t = jnp.zeros((Hp, 3 * Hp), cdt)
    for g in range(3):
        wih_t = wih_t.at[:, g * Hp:g * Hp + H].set(
            jnp.transpose(w_ih[g * H:(g + 1) * H, :]).astype(cdt))
        whh_t = whh_t.at[:H, g * Hp:g * Hp + H].set(
            jnp.transpose(w_hh[g * H:(g + 1) * H, :]).astype(cdt))

    # Fold b_hr, b_hz into the input-projection bias; b_hn stays separate
    # (it must be added before the r* multiply).  All biases stay f32.
    gib = jnp.zeros((1, 3 * Hp), f32)
    gib = gib.at[0, 0 * Hp:0 * Hp + H].set(b_ih[0 * H:1 * H] + b_hh[0 * H:1 * H])
    gib = gib.at[0, 1 * Hp:1 * Hp + H].set(b_ih[1 * H:2 * H] + b_hh[1 * H:2 * H])
    gib = gib.at[0, 2 * Hp:2 * Hp + H].set(b_ih[2 * H:3 * H])
    bhn = jnp.zeros((1, Hp), f32).at[0, :H].set(b_hh[2 * H:3 * H])

    wc_t = jnp.zeros((Hp, Cp), cdt).at[:H, :C].set(jnp.transpose(w_c).astype(cdt))
    bc_p = jnp.zeros((1, Cp), f32).at[0, :C].set(b_c)

    out_tm = pl.pallas_call(
        _phase_gru_kernel,
        out_shape=jax.ShapeDtypeStruct((Tp, Bp, Cp), cdt),
        grid_spec=pltpu.PrefetchScalarGridSpec(
            num_scalar_prefetch=0,
            grid=(NB, NT),                                        # (batch shard, time chunk)
            in_specs=[
                pl.BlockSpec((Tc, Bs, D), lambda b, t: (t, b, 0)),    # x chunk
                pl.BlockSpec((D, 3 * Hp), lambda b, t: (0, 0)),       # W_ih^T (resident)
                pl.BlockSpec((Hp, 3 * Hp), lambda b, t: (0, 0)),      # W_hh^T (resident)
                pl.BlockSpec((1, 3 * Hp), lambda b, t: (0, 0)),       # folded input bias
                pl.BlockSpec((1, Hp), lambda b, t: (0, 0)),           # b_hn
                pl.BlockSpec((Hp, Cp), lambda b, t: (0, 0)),          # W_c^T
                pl.BlockSpec((1, Cp), lambda b, t: (0, 0)),           # b_c
            ],
            out_specs=pl.BlockSpec((Tc, Bs, Cp), lambda b, t: (t, b, 0)),
            scratch_shapes=[
                pltpu.VMEM((Bs, Hp), jnp.float32),            # h carry (persists across chunks)
                pltpu.VMEM((Tc, Bs, 3 * Hp), jnp.float32),    # precomputed gi for the chunk
                pltpu.VMEM((Tc, Bs, Hp), jnp.float32),        # hidden states for the chunk
            ],
        ),
        compiler_params=pltpu.CompilerParams(
            dimension_semantics=("parallel", "arbitrary"),
            vmem_limit_bytes=vmem_limit,
        ),
    )(x_tm, wih_t, whh_t, gib, bhn, wc_t, bc_p)

    # (Tp, Bp, Cp) -> (B, T, C) float32; slice + transpose fuse into one small copy.
    return jnp.swapaxes(out_tm[:T, :B, :C], 0, 1).astype(jnp.float32)


def init_params(key, input_dim, hidden_dim, num_classes):
    """Deterministic init mirroring PyTorch shapes: U(-1/sqrt(H), 1/sqrt(H))."""
    ks = jax.random.split(key, 6)
    bound = 1.0 / math.sqrt(hidden_dim)
    u = lambda k, shape: jax.random.uniform(k, shape, jnp.float32, -bound, bound)
    return {
        "w_ih": u(ks[0], (3 * hidden_dim, input_dim)),   # weight_ih_l0
        "w_hh": u(ks[1], (3 * hidden_dim, hidden_dim)),  # weight_hh_l0
        "b_ih": u(ks[2], (3 * hidden_dim,)),             # bias_ih_l0
        "b_hh": u(ks[3], (3 * hidden_dim,)),             # bias_hh_l0
        "w_c":  u(ks[4], (num_classes, hidden_dim)),     # classifier.weight
        "b_c":  u(ks[5], (num_classes,)),                # classifier.bias
    }


def _reference_forward(x, p):
    """Pure-JAX reference (same math as torch.nn.GRU + Linear), lax.scan."""
    B, T, D = x.shape
    H = p["w_hh"].shape[1]

    def step(h, x_t):
        gi = x_t @ p["w_ih"].T + p["b_ih"]
        gh = h @ p["w_hh"].T + p["b_hh"]
        i_r, i_z, i_n = jnp.split(gi, 3, axis=-1)
        h_r, h_z, h_n = jnp.split(gh, 3, axis=-1)
        r = jax.nn.sigmoid(i_r + h_r)
        z = jax.nn.sigmoid(i_z + h_z)
        n = jnp.tanh(i_n + r * h_n)
        h_new = (1.0 - z) * n + z * h
        return h_new, h_new

    h0 = jnp.zeros((B, H), jnp.float32)
    _, hs = jax.lax.scan(step, h0, jnp.transpose(x, (1, 0, 2)))
    out = jnp.transpose(hs, (1, 0, 2))
    return out @ p["w_c"].T + p["b_c"]


if __name__ == "__main__":
    # Small shapes consistent with the module's forward: x is (batch, seq, input_dim)
    B, T, D, H, C = 2, 8, 64, 32, 7

    key = jax.random.PRNGKey(0)
    k_x, k_p = jax.random.split(key)
    x = jax.random.normal(k_x, (B, T, D), jnp.float32)
    params = init_params(k_p, input_dim=D, hidden_dim=H, num_classes=C)

    ref = _reference_forward(x, params)

    # f32 compute path: tight structural check against the pure-JAX reference.
    out_f32 = jax.block_until_ready(phase_gru_forward(x, params, compute_dtype=jnp.float32))
    assert out_f32.shape == (B, T, C), out_f32.shape
    assert jnp.allclose(out_f32, ref, atol=1e-4, rtol=1e-4), \
        float(jnp.max(jnp.abs(out_f32 - ref)))

    # bf16-MXU path (production config for v6e/v7x): looser numeric check
    # (bf16 matmul inputs, f32 accumulation / gate math / h carry).
    out_bf16 = jax.block_until_ready(phase_gru_forward(x, params, compute_dtype=jnp.bfloat16))
    assert out_bf16.shape == (B, T, C), out_bf16.shape
    assert jnp.allclose(out_bf16, ref, atol=5e-2, rtol=5e-2), \
        float(jnp.max(jnp.abs(out_bf16 - ref)))

    print("KERNEL_OK")
</pallas_src>

<mosaic_0001>
module attributes {stable_mosaic.version = 11 : i64} {
  func.func @_phase_gru_kernel(%arg0: i32, %arg1: i32, %arg2: memref<8x8x64xf32, #tpu.memory_space<vmem>>, %arg3: memref<64x384xf32, #tpu.memory_space<vmem>>, %arg4: memref<128x384xf32, #tpu.memory_space<vmem>>, %arg5: memref<1x384xf32, #tpu.memory_space<vmem>>, %arg6: memref<1x128xf32, #tpu.memory_space<vmem>>, %arg7: memref<128x128xf32, #tpu.memory_space<vmem>>, %arg8: memref<1x128xf32, #tpu.memory_space<vmem>>, %arg9: memref<8x8x128xf32, #tpu.memory_space<vmem>>, %arg10: memref<8x128xf32, #tpu.memory_space<vmem>>, %arg11: memref<8x8x384xf32, #tpu.memory_space<vmem>>, %arg12: memref<8x8x128xf32, #tpu.memory_space<vmem>>) attributes {dimension_semantics = [#tpu.dimension_semantics<parallel>, #tpu.dimension_semantics<arbitrary>], iteration_bounds = array<i64: 1, 1>, scalar_prefetch = 0 : i64, scratch_operands = 3 : i64, tpu.core_type = #tpu.core_type<tc>, window_params = [{transform_indices = @transform_0, window_bounds = array<i64: 8, 8, 64>}, {pipeline_mode = #tpu.pipeline_mode<synchronous>, transform_indices = @transform_1, window_bounds = array<i64: 64, 384>}, {pipeline_mode = #tpu.pipeline_mode<synchronous>, transform_indices = @transform_2, window_bounds = array<i64: 128, 384>}, {pipeline_mode = #tpu.pipeline_mode<synchronous>, transform_indices = @transform_3, window_bounds = array<i64: 1, 384>}, {pipeline_mode = #tpu.pipeline_mode<synchronous>, transform_indices = @transform_4, window_bounds = array<i64: 1, 128>}, {pipeline_mode = #tpu.pipeline_mode<synchronous>, transform_indices = @transform_5, window_bounds = array<i64: 128, 128>}, {pipeline_mode = #tpu.pipeline_mode<synchronous>, transform_indices = @transform_6, window_bounds = array<i64: 1, 128>}, {transform_indices = @transform_7, window_bounds = array<i64: 8, 8, 128>}]} {
    %c0_i32 = arith.constant 0 : i32
    %0 = arith.cmpi eq, %arg1, %c0_i32 : i32
    %1 = arith.extui %0 : i1 to i32
    %c0_i32_0 = arith.constant 0 : i32
    %2 = arith.cmpi ne, %1, %c0_i32_0 : i32
    scf.if %2 {
      %cst_86 = arith.constant 0.000000e+00 : f32
      %297 = vector.broadcast %cst_86 : f32 to vector<8x128xf32>
      %c0_87 = arith.constant 0 : index
      %c0_88 = arith.constant 0 : index
      %298 = vector.load %arg10[%c0_87, %c0_88] : memref<8x128xf32, #tpu.memory_space<vmem>>, vector<8x128xf32>
      tpu.vector_store %arg10[%c0_87, %c0_88], %297 {strides = array<i32>} : memref<8x128xf32, #tpu.memory_space<vmem>>, vector<8x128xf32>,
    } else {
    }
    %c0 = arith.constant 0 : index
    %c0_1 = arith.constant 0 : index
    %c0_2 = arith.constant 0 : index
    %3 = vector.load %arg2[%c0, %c0_1, %c0_2] : memref<8x8x64xf32, #tpu.memory_space<vmem>>, vector<8x8x64xf32>
    %4 = vector.shape_cast %3 : vector<8x8x64xf32> to vector<64x64xf32>
    %c0_3 = arith.constant 0 : index
    %c0_4 = arith.constant 0 : index
    %5 = vector.load %arg3[%c0_3, %c0_4] : memref<64x384xf32, #tpu.memory_space<vmem>>, vector<64x384xf32>
    %cst = arith.constant dense<0.000000e+00> : vector<64x384xf32>
    %6 = tpu.matmul %4, %5, %cst {dimension_numbers = #tpu.dot_dimension_numbers<[1], [0], [0], [1], [0, 0, 1, 1], [], []>} : vector<64x64xf32>, vector<64x384xf32>, vector<64x384xf32> -> vector<64x384xf32>
    %c0_5 = arith.constant 0 : index
    %c0_6 = arith.constant 0 : index
    %7 = vector.load %arg5[%c0_5, %c0_6] : memref<1x384xf32, #tpu.memory_space<vmem>>, vector<1x384xf32>
    %8 = vector.broadcast %7 : vector<1x384xf32> to vector<64x384xf32>
    %9 = arith.addf %6, %8 : vector<64x384xf32>
    %10 = vector.shape_cast %9 : vector<64x384xf32> to vector<8x8x384xf32>
    %c0_7 = arith.constant 0 : index
    %c0_8 = arith.constant 0 : index
    %c0_9 = arith.constant 0 : index
    %11 = vector.load %arg11[%c0_7, %c0_8, %c0_9] : memref<8x8x384xf32, #tpu.memory_space<vmem>>, vector<8x8x384xf32>
    tpu.vector_store %arg11[%c0_7, %c0_8, %c0_9], %10 {strides = array<i32>} : memref<8x8x384xf32, #tpu.memory_space<vmem>>, vector<8x8x384xf32>,
    %c0_10 = arith.constant 0 : index
    %c0_11 = arith.constant 0 : index
    %12 = vector.load %arg4[%c0_10, %c0_11] : memref<128x384xf32, #tpu.memory_space<vmem>>, vector<128x384xf32>
    %c0_12 = arith.constant 0 : index
    %c0_13 = arith.constant 0 : index
    %13 = vector.load %arg6[%c0_12, %c0_13] : memref<1x128xf32, #tpu.memory_space<vmem>>, vector<1x128xf32>
    %c0_14 = arith.constant 0 : index
    %c0_15 = arith.constant 0 : index
    %14 = vector.load %arg10[%c0_14, %c0_15] : memref<8x128xf32, #tpu.memory_space<vmem>>, vector<8x128xf32>
    %c0_i32_16 = arith.constant 0 : i32
    %15 = arith.index_cast %c0_i32_16 : i32 to index
    %c0_17 = arith.constant 0 : index
    %c0_18 = arith.constant 0 : index
    %16 = vector.load %arg11[%15, %c0_17, %c0_18] : memref<8x8x384xf32, #tpu.memory_space<vmem>>, vector<1x8x384xf32>
    %17 = vector.shape_cast %16 : vector<1x8x384xf32> to vector<8x384xf32>
    %cst_19 = arith.constant dense<0.000000e+00> : vector<8x384xf32>
    %18 = tpu.matmul %14, %12, %cst_19 {dimension_numbers = #tpu.dot_dimension_numbers<[1], [0], [0], [1], [0, 0, 1, 1], [], []>} : vector<8x128xf32>, vector<128x384xf32>, vector<8x384xf32> -> vector<8x384xf32>
    %19 = vector.extract_strided_slice %17 {offsets = [0, 0], sizes = [8, 128], strides = [1, 1]} : vector<8x384xf32> to vector<8x128xf32>
    %20 = vector.extract_strided_slice %18 {offsets = [0, 0], sizes = [8, 128], strides = [1, 1]} : vector<8x384xf32> to vector<8x128xf32>
    %21 = arith.addf %19, %20 : vector<8x128xf32>
    %22 = arith.negf %21 : vector<8x128xf32>
    %23 = math.exp %22 : vector<8x128xf32>
    %cst_20 = arith.constant 1.000000e+00 : f32
    %24 = vector.broadcast %cst_20 : f32 to vector<8x128xf32>
    %25 = arith.addf %24, %23 : vector<8x128xf32>
    %26 = arith.divf %24, %25 : vector<8x128xf32>
    %27 = vector.extract_strided_slice %17 {offsets = [0, 128], sizes = [8, 128], strides = [1, 1]} : vector<8x384xf32> to vector<8x128xf32>
    %28 = vector.extract_strided_slice %18 {offsets = [0, 128], sizes = [8, 128], strides = [1, 1]} : vector<8x384xf32> to vector<8x128xf32>
    %29 = arith.addf %27, %28 : vector<8x128xf32>
    %30 = arith.negf %29 : vector<8x128xf32>
    %31 = math.exp %30 : vector<8x128xf32>
    %cst_21 = arith.constant 1.000000e+00 : f32
    %32 = vector.broadcast %cst_21 : f32 to vector<8x128xf32>
    %33 = arith.addf %32, %31 : vector<8x128xf32>
    %34 = arith.divf %32, %33 : vector<8x128xf32>
    %35 = vector.extract_strided_slice %17 {offsets = [0, 256], sizes = [8, 128], strides = [1, 1]} : vector<8x384xf32> to vector<8x128xf32>
    %36 = vector.extract_strided_slice %18 {offsets = [0, 256], sizes = [8, 128], strides = [1, 1]} : vector<8x384xf32> to vector<8x128xf32>
    %37 = vector.broadcast %13 : vector<1x128xf32> to vector<8x128xf32>
    %38 = arith.addf %36, %37 : vector<8x128xf32>
    %39 = arith.mulf %26, %38 : vector<8x128xf32>
    %40 = arith.addf %35, %39 : vector<8x128xf32>
    %41 = math.tanh %40 : vector<8x128xf32>
    %42 = arith.subf %14, %41 : vector<8x128xf32>
    %43 = arith.mulf %34, %42 : vector<8x128xf32>
    %44 = arith.addf %41, %43 : vector<8x128xf32>
    %45 = arith.index_cast %c0_i32_16 : i32 to index
    %c0_22 = arith.constant 0 : index
    %c0_23 = arith.constant 0 : index
    %46 = vector.load %arg12[%45, %c0_22, %c0_23] : memref<8x8x128xf32, #tpu.memory_space<vmem>>, vector<1x8x128xf32>
    %47 = vector.shape_cast %46 : vector<1x8x128xf32> to vector<8x128xf32>
    %48 = vector.shape_cast %44 : vector<8x128xf32> to vector<1x8x128xf32>
    tpu.vector_store %arg12[%45, %c0_22, %c0_23], %48 {strides = array<i32>} : memref<8x8x128xf32, #tpu.memory_space<vmem>>, vector<1x8x128xf32>,
    %c1_i32 = arith.constant 1 : i32
    %49 = arith.index_cast %c1_i32 : i32 to index
    %c0_24 = arith.constant 0 : index
    %c0_25 = arith.constant 0 : index
    %50 = vector.load %arg11[%49, %c0_24, %c0_25] : memref<8x8x384xf32, #tpu.memory_space<vmem>>, vector<1x8x384xf32>
    %51 = vector.shape_cast %50 : vector<1x8x384xf32> to vector<8x384xf32>
    %cst_26 = arith.constant dense<0.000000e+00> : vector<8x384xf32>
    %52 = tpu.matmul %44, %12, %cst_26 {dimension_numbers = #tpu.dot_dimension_numbers<[1], [0], [0], [1], [0, 0, 1, 1], [], []>} : vector<8x128xf32>, vector<128x384xf32>, vector<8x384xf32> -> vector<8x384xf32>
    %53 = vector.extract_strided_slice %51 {offsets = [0, 0], sizes = [8, 128], strides = [1, 1]} : vector<8x384xf32> to vector<8x128xf32>
    %54 = vector.extract_strided_slice %52 {offsets = [0, 0], sizes = [8, 128], strides = [1, 1]} : vector<8x384xf32> to vector<8x128xf32>
    %55 = arith.addf %53, %54 : vector<8x128xf32>
    %56 = arith.negf %55 : vector<8x128xf32>
    %57 = math.exp %56 : vector<8x128xf32>
    %cst_27 = arith.constant 1.000000e+00 : f32
    %58 = vector.broadcast %cst_27 : f32 to vector<8x128xf32>
    %59 = arith.addf %58, %57 : vector<8x128xf32>
    %60 = arith.divf %58, %59 : vector<8x128xf32>
    %61 = vector.extract_strided_slice %51 {offsets = [0, 128], sizes = [8, 128], strides = [1, 1]} : vector<8x384xf32> to vector<8x128xf32>
    %62 = vector.extract_strided_slice %52 {offsets = [0, 128], sizes = [8, 128], strides = [1, 1]} : vector<8x384xf32> to vector<8x128xf32>
    %63 = arith.addf %61, %62 : vector<8x128xf32>
    %64 = arith.negf %63 : vector<8x128xf32>
    %65 = math.exp %64 : vector<8x128xf32>
    %cst_28 = arith.constant 1.000000e+00 : f32
    %66 = vector.broadcast %cst_28 : f32 to vector<8x128xf32>
    %67 = arith.addf %66, %65 : vector<8x128xf32>
    %68 = arith.divf %66, %67 : vector<8x128xf32>
    %69 = vector.extract_strided_slice %51 {offsets = [0, 256], sizes = [8, 128], strides = [1, 1]} : vector<8x384xf32> to vector<8x128xf32>
    %70 = vector.extract_strided_slice %52 {offsets = [0, 256], sizes = [8, 128], strides = [1, 1]} : vector<8x384xf32> to vector<8x128xf32>
    %71 = vector.broadcast %13 : vector<1x128xf32> to vector<8x128xf32>
    %72 = arith.addf %70, %71 : vector<8x128xf32>
    %73 = arith.mulf %60, %72 : vector<8x128xf32>
    %74 = arith.addf %69, %73 : vector<8x128xf32>
    %75 = math.tanh %74 : vector<8x128xf32>
    %76 = arith.subf %44, %75 : vector<8x128xf32>
    %77 = arith.mulf %68, %76 : vector<8x128xf32>
    %78 = arith.addf %75, %77 : vector<8x128xf32>
    %79 = arith.index_cast %c1_i32 : i32 to index
    %c0_29 = arith.constant 0 : index
    %c0_30 = arith.constant 0 : index
    %80 = vector.load %arg12[%79, %c0_29, %c0_30] : memref<8x8x128xf32, #tpu.memory_space<vmem>>, vector<1x8x128xf32>
    %81 = vector.shape_cast %80 : vector<1x8x128xf32> to vector<8x128xf32>
    %82 = vector.shape_cast %78 : vector<8x128xf32> to vector<1x8x128xf32>
    tpu.vector_store %arg12[%79, %c0_29, %c0_30], %82 {strides = array<i32>} : memref<8x8x128xf32, #tpu.memory_space<vmem>>, vector<1x8x128xf32>,
    %c2_i32 = arith.constant 2 : i32
    %83 = arith.index_cast %c2_i32 : i32 to index
    %c0_31 = arith.constant 0 : index
    %c0_32 = arith.constant 0 : index
    %84 = vector.load %arg11[%83, %c0_31, %c0_32] : memref<8x8x384xf32, #tpu.memory_space<vmem>>, vector<1x8x384xf32>
    %85 = vector.shape_cast %84 : vector<1x8x384xf32> to vector<8x384xf32>
    %cst_33 = arith.constant dense<0.000000e+00> : vector<8x384xf32>
    %86 = tpu.matmul %78, %12, %cst_33 {dimension_numbers = #tpu.dot_dimension_numbers<[1], [0], [0], [1], [0, 0, 1, 1], [], []>} : vector<8x128xf32>, vector<128x384xf32>, vector<8x384xf32> -> vector<8x384xf32>
    %87 = vector.extract_strided_slice %85 {offsets = [0, 0], sizes = [8, 128], strides = [1, 1]} : vector<8x384xf32> to vector<8x128xf32>
    %88 = vector.extract_strided_slice %86 {offsets = [0, 0], sizes = [8, 128], strides = [1, 1]} : vector<8x384xf32> to vector<8x128xf32>
    %89 = arith.addf %87, %88 : vector<8x128xf32>
    %90 = arith.negf %89 : vector<8x128xf32>
    %91 = math.exp %90 : vector<8x128xf32>
    %cst_34 = arith.constant 1.000000e+00 : f32
    %92 = vector.broadcast %cst_34 : f32 to vector<8x128xf32>
    %93 = arith.addf %92, %91 : vector<8x128xf32>
    %94 = arith.divf %92, %93 : vector<8x128xf32>
    %95 = vector.extract_strided_slice %85 {offsets = [0, 128], sizes = [8, 128], strides = [1, 1]} : vector<8x384xf32> to vector<8x128xf32>
    %96 = vector.extract_strided_slice %86 {offsets = [0, 128], sizes = [8, 128], strides = [1, 1]} : vector<8x384xf32> to vector<8x128xf32>
    %97 = arith.addf %95, %96 : vector<8x128xf32>
    %98 = arith.negf %97 : vector<8x128xf32>
    %99 = math.exp %98 : vector<8x128xf32>
    %cst_35 = arith.constant 1.000000e+00 : f32
    %100 = vector.broadcast %cst_35 : f32 to vector<8x128xf32>
    %101 = arith.addf %100, %99 : vector<8x128xf32>
    %102 = arith.divf %100, %101 : vector<8x128xf32>
    %103 = vector.extract_strided_slice %85 {offsets = [0, 256], sizes = [8, 128], strides = [1, 1]} : vector<8x384xf32> to vector<8x128xf32>
    %104 = vector.extract_strided_slice %86 {offsets = [0, 256], sizes = [8, 128], strides = [1, 1]} : vector<8x384xf32> to vector<8x128xf32>
    %105 = vector.broadcast %13 : vector<1x128xf32> to vector<8x128xf32>
    %106 = arith.addf %104, %105 : vector<8x128xf32>
    %107 = arith.mulf %94, %106 : vector<8x128xf32>
    %108 = arith.addf %103, %107 : vector<8x128xf32>
    %109 = math.tanh %108 : vector<8x128xf32>
    %110 = arith.subf %78, %109 : vector<8x128xf32>
    %111 = arith.mulf %102, %110 : vector<8x128xf32>
    %112 = arith.addf %109, %111 : vector<8x128xf32>
    %113 = arith.index_cast %c2_i32 : i32 to index
    %c0_36 = arith.constant 0 : index
    %c0_37 = arith.constant 0 : index
    %114 = vector.load %arg12[%113, %c0_36, %c0_37] : memref<8x8x128xf32, #tpu.memory_space<vmem>>, vector<1x8x128xf32>
    %115 = vector.shape_cast %114 : vector<1x8x128xf32> to vector<8x128xf32>
    %116 = vector.shape_cast %112 : vector<8x128xf32> to vector<1x8x128xf32>
    tpu.vector_store %arg12[%113, %c0_36, %c0_37], %116 {strides = array<i32>} : memref<8x8x128xf32, #tpu.memory_space<vmem>>, vector<1x8x128xf32>,
    %c3_i32 = arith.constant 3 : i32
    %117 = arith.index_cast %c3_i32 : i32 to index
    %c0_38 = arith.constant 0 : index
    %c0_39 = arith.constant 0 : index
    %118 = vector.load %arg11[%117, %c0_38, %c0_39] : memref<8x8x384xf32, #tpu.memory_space<vmem>>, vector<1x8x384xf32>
    %119 = vector.shape_cast %118 : vector<1x8x384xf32> to vector<8x384xf32>
    %cst_40 = arith.constant dense<0.000000e+00> : vector<8x384xf32>
    %120 = tpu.matmul %112, %12, %cst_40 {dimension_numbers = #tpu.dot_dimension_numbers<[1], [0], [0], [1], [0, 0, 1, 1], [], []>} : vector<8x128xf32>, vector<128x384xf32>, vector<8x384xf32> -> vector<8x384xf32>
    %121 = vector.extract_strided_slice %119 {offsets = [0, 0], sizes = [8, 128], strides = [1, 1]} : vector<8x384xf32> to vector<8x128xf32>
    %122 = vector.extract_strided_slice %120 {offsets = [0, 0], sizes = [8, 128], strides = [1, 1]} : vector<8x384xf32> to vector<8x128xf32>
    %123 = arith.addf %121, %122 : vector<8x128xf32>
    %124 = arith.negf %123 : vector<8x128xf32>
    %125 = math.exp %124 : vector<8x128xf32>
    %cst_41 = arith.constant 1.000000e+00 : f32
    %126 = vector.broadcast %cst_41 : f32 to vector<8x128xf32>
    %127 = arith.addf %126, %125 : vector<8x128xf32>
    %128 = arith.divf %126, %127 : vector<8x128xf32>
    %129 = vector.extract_strided_slice %119 {offsets = [0, 128], sizes = [8, 128], strides = [1, 1]} : vector<8x384xf32> to vector<8x128xf32>
    %130 = vector.extract_strided_slice %120 {offsets = [0, 128], sizes = [8, 128], strides = [1, 1]} : vector<8x384xf32> to vector<8x128xf32>
    %131 = arith.addf %129, %130 : vector<8x128xf32>
    %132 = arith.negf %131 : vector<8x128xf32>
    %133 = math.exp %132 : vector<8x128xf32>
    %cst_42 = arith.constant 1.000000e+00 : f32
    %134 = vector.broadcast %cst_42 : f32 to vector<8x128xf32>
    %135 = arith.addf %134, %133 : vector<8x128xf32>
    %136 = arith.divf %134, %135 : vector<8x128xf32>
    %137 = vector.extract_strided_slice %119 {offsets = [0, 256], sizes = [8, 128], strides = [1, 1]} : vector<8x384xf32> to vector<8x128xf32>
    %138 = vector.extract_strided_slice %120 {offsets = [0, 256], sizes = [8, 128], strides = [1, 1]} : vector<8x384xf32> to vector<8x128xf32>
    %139 = vector.broadcast %13 : vector<1x128xf32> to vector<8x128xf32>
    %140 = arith.addf %138, %139 : vector<8x128xf32>
    %141 = arith.mulf %128, %140 : vector<8x128xf32>
    %142 = arith.addf %137, %141 : vector<8x128xf32>
    %143 = math.tanh %142 : vector<8x128xf32>
    %144 = arith.subf %112, %143 : vector<8x128xf32>
    %145 = arith.mulf %136, %144 : vector<8x128xf32>
    %146 = arith.addf %143, %145 : vector<8x128xf32>
    %147 = arith.index_cast %c3_i32 : i32 to index
    %c0_43 = arith.constant 0 : index
    %c0_44 = arith.constant 0 : index
    %148 = vector.load %arg12[%147, %c0_43, %c0_44] : memref<8x8x128xf32, #tpu.memory_space<vmem>>, vector<1x8x128xf32>
    %149 = vector.shape_cast %148 : vector<1x8x128xf32> to vector<8x128xf32>
    %150 = vector.shape_cast %146 : vector<8x128xf32> to vector<1x8x128xf32>
    tpu.vector_store %arg12[%147, %c0_43, %c0_44], %150 {strides = array<i32>} : memref<8x8x128xf32, #tpu.memory_space<vmem>>, vector<1x8x128xf32>,
    %c4_i32 = arith.constant 4 : i32
    %151 = arith.index_cast %c4_i32 : i32 to index
    %c0_45 = arith.constant 0 : index
    %c0_46 = arith.constant 0 : index
    %152 = vector.load %arg11[%151, %c0_45, %c0_46] : memref<8x8x384xf32, #tpu.memory_space<vmem>>, vector<1x8x384xf32>
    %153 = vector.shape_cast %152 : vector<1x8x384xf32> to vector<8x384xf32>
    %cst_47 = arith.constant dense<0.000000e+00> : vector<8x384xf32>
    %154 = tpu.matmul %146, %12, %cst_47 {dimension_numbers = #tpu.dot_dimension_numbers<[1], [0], [0], [1], [0, 0, 1, 1], [], []>} : vector<8x128xf32>, vector<128x384xf32>, vector<8x384xf32> -> vector<8x384xf32>
    %155 = vector.extract_strided_slice %153 {offsets = [0, 0], sizes = [8, 128], strides = [1, 1]} : vector<8x384xf32> to vector<8x128xf32>
    %156 = vector.extract_strided_slice %154 {offsets = [0, 0], sizes = [8, 128], strides = [1, 1]} : vector<8x384xf32> to vector<8x128xf32>
    %157 = arith.addf %155, %156 : vector<8x128xf32>
    %158 = arith.negf %157 : vector<8x128xf32>
    %159 = math.exp %158 : vector<8x128xf32>
    %cst_48 = arith.constant 1.000000e+00 : f32
    %160 = vector.broadcast %cst_48 : f32 to vector<8x128xf32>
    %161 = arith.addf %160, %159 : vector<8x128xf32>
    %162 = arith.divf %160, %161 : vector<8x128xf32>
    %163 = vector.extract_strided_slice %153 {offsets = [0, 128], sizes = [8, 128], strides = [1, 1]} : vector<8x384xf32> to vector<8x128xf32>
    %164 = vector.extract_strided_slice %154 {offsets = [0, 128], sizes = [8, 128], strides = [1, 1]} : vector<8x384xf32> to vector<8x128xf32>
    %165 = arith.addf %163, %164 : vector<8x128xf32>
    %166 = arith.negf %165 : vector<8x128xf32>
    %167 = math.exp %166 : vector<8x128xf32>
    %cst_49 = arith.constant 1.000000e+00 : f32
    %168 = vector.broadcast %cst_49 : f32 to vector<8x128xf32>
    %169 = arith.addf %168, %167 : vector<8x128xf32>
    %170 = arith.divf %168, %169 : vector<8x128xf32>
    %171 = vector.extract_strided_slice %153 {offsets = [0, 256], sizes = [8, 128], strides = [1, 1]} : vector<8x384xf32> to vector<8x128xf32>
    %172 = vector.extract_strided_slice %154 {offsets = [0, 256], sizes = [8, 128], strides = [1, 1]} : vector<8x384xf32> to vector<8x128xf32>
    %173 = vector.broadcast %13 : vector<1x128xf32> to vector<8x128xf32>
    %174 = arith.addf %172, %173 : vector<8x128xf32>
    %175 = arith.mulf %162, %174 : vector<8x128xf32>
    %176 = arith.addf %171, %175 : vector<8x128xf32>
    %177 = math.tanh %176 : vector<8x128xf32>
    %178 = arith.subf %146, %177 : vector<8x128xf32>
    %179 = arith.mulf %170, %178 : vector<8x128xf32>
    %180 = arith.addf %177, %179 : vector<8x128xf32>
    %181 = arith.index_cast %c4_i32 : i32 to index
    %c0_50 = arith.constant 0 : index
    %c0_51 = arith.constant 0 : index
    %182 = vector.load %arg12[%181, %c0_50, %c0_51] : memref<8x8x128xf32, #tpu.memory_space<vmem>>, vector<1x8x128xf32>
    %183 = vector.shape_cast %182 : vector<1x8x128xf32> to vector<8x128xf32>
    %184 = vector.shape_cast %180 : vector<8x128xf32> to vector<1x8x128xf32>
    tpu.vector_store %arg12[%181, %c0_50, %c0_51], %184 {strides = array<i32>} : memref<8x8x128xf32, #tpu.memory_space<vmem>>, vector<1x8x128xf32>,
    %c5_i32 = arith.constant 5 : i32
    %185 = arith.index_cast %c5_i32 : i32 to index
    %c0_52 = arith.constant 0 : index
    %c0_53 = arith.constant 0 : index
    %186 = vector.load %arg11[%185, %c0_52, %c0_53] : memref<8x8x384xf32, #tpu.memory_space<vmem>>, vector<1x8x384xf32>
    %187 = vector.shape_cast %186 : vector<1x8x384xf32> to vector<8x384xf32>
    %cst_54 = arith.constant dense<0.000000e+00> : vector<8x384xf32>
    %188 = tpu.matmul %180, %12, %cst_54 {dimension_numbers = #tpu.dot_dimension_numbers<[1], [0], [0], [1], [0, 0, 1, 1], [], []>} : vector<8x128xf32>, vector<128x384xf32>, vector<8x384xf32> -> vector<8x384xf32>
    %189 = vector.extract_strided_slice %187 {offsets = [0, 0], sizes = [8, 128], strides = [1, 1]} : vector<8x384xf32> to vector<8x128xf32>
    %190 = vector.extract_strided_slice %188 {offsets = [0, 0], sizes = [8, 128], strides = [1, 1]} : vector<8x384xf32> to vector<8x128xf32>
    %191 = arith.addf %189, %190 : vector<8x128xf32>
    %192 = arith.negf %191 : vector<8x128xf32>
    %193 = math.exp %192 : vector<8x128xf32>
    %cst_55 = arith.constant 1.000000e+00 : f32
    %194 = vector.broadcast %cst_55 : f32 to vector<8x128xf32>
    %195 = arith.addf %194, %193 : vector<8x128xf32>
    %196 = arith.divf %194, %195 : vector<8x128xf32>
    %197 = vector.extract_strided_slice %187 {offsets = [0, 128], sizes = [8, 128], strides = [1, 1]} : vector<8x384xf32> to vector<8x128xf32>
    %198 = vector.extract_strided_slice %188 {offsets = [0, 128], sizes = [8, 128], strides = [1, 1]} : vector<8x384xf32> to vector<8x128xf32>
    %199 = arith.addf %197, %198 : vector<8x128xf32>
    %200 = arith.negf %199 : vector<8x128xf32>
    %201 = math.exp %200 : vector<8x128xf32>
    %cst_56 = arith.constant 1.000000e+00 : f32
    %202 = vector.broadcast %cst_56 : f32 to vector<8x128xf32>
    %203 = arith.addf %202, %201 : vector<8x128xf32>
    %204 = arith.divf %202, %203 : vector<8x128xf32>
    %205 = vector.extract_strided_slice %187 {offsets = [0, 256], sizes = [8, 128], strides = [1, 1]} : vector<8x384xf32> to vector<8x128xf32>
    %206 = vector.extract_strided_slice %188 {offsets = [0, 256], sizes = [8, 128], strides = [1, 1]} : vector<8x384xf32> to vector<8x128xf32>
    %207 = vector.broadcast %13 : vector<1x128xf32> to vector<8x128xf32>
    %208 = arith.addf %206, %207 : vector<8x128xf32>
    %209 = arith.mulf %196, %208 : vector<8x128xf32>
    %210 = arith.addf %205, %209 : vector<8x128xf32>
    %211 = math.tanh %210 : vector<8x128xf32>
    %212 = arith.subf %180, %211 : vector<8x128xf32>
    %213 = arith.mulf %204, %212 : vector<8x128xf32>
    %214 = arith.addf %211, %213 : vector<8x128xf32>
    %215 = arith.index_cast %c5_i32 : i32 to index
    %c0_57 = arith.constant 0 : index
    %c0_58 = arith.constant 0 : index
    %216 = vector.load %arg12[%215, %c0_57, %c0_58] : memref<8x8x128xf32, #tpu.memory_space<vmem>>, vector<1x8x128xf32>
    %217 = vector.shape_cast %216 : vector<1x8x128xf32> to vector<8x128xf32>
    %218 = vector.shape_cast %214 : vector<8x128xf32> to vector<1x8x128xf32>
    tpu.vector_store %arg12[%215, %c0_57, %c0_58], %218 {strides = array<i32>} : memref<8x8x128xf32, #tpu.memory_space<vmem>>, vector<1x8x128xf32>,
    %c6_i32 = arith.constant 6 : i32
    %219 = arith.index_cast %c6_i32 : i32 to index
    %c0_59 = arith.constant 0 : index
    %c0_60 = arith.constant 0 : index
    %220 = vector.load %arg11[%219, %c0_59, %c0_60] : memref<8x8x384xf32, #tpu.memory_space<vmem>>, vector<1x8x384xf32>
    %221 = vector.shape_cast %220 : vector<1x8x384xf32> to vector<8x384xf32>
    %cst_61 = arith.constant dense<0.000000e+00> : vector<8x384xf32>
    %222 = tpu.matmul %214, %12, %cst_61 {dimension_numbers = #tpu.dot_dimension_numbers<[1], [0], [0], [1], [0, 0, 1, 1], [], []>} : vector<8x128xf32>, vector<128x384xf32>, vector<8x384xf32> -> vector<8x384xf32>
    %223 = vector.extract_strided_slice %221 {offsets = [0, 0], sizes = [8, 128], strides = [1, 1]} : vector<8x384xf32> to vector<8x128xf32>
    %224 = vector.extract_strided_slice %222 {offsets = [0, 0], sizes = [8, 128], strides = [1, 1]} : vector<8x384xf32> to vector<8x128xf32>
    %225 = arith.addf %223, %224 : vector<8x128xf32>
    %226 = arith.negf %225 : vector<8x128xf32>
    %227 = math.exp %226 : vector<8x128xf32>
    %cst_62 = arith.constant 1.000000e+00 : f32
    %228 = vector.broadcast %cst_62 : f32 to vector<8x128xf32>
    %229 = arith.addf %228, %227 : vector<8x128xf32>
    %230 = arith.divf %228, %229 : vector<8x128xf32>
    %231 = vector.extract_strided_slice %221 {offsets = [0, 128], sizes = [8, 128], strides = [1, 1]} : vector<8x384xf32> to vector<8x128xf32>
    %232 = vector.extract_strided_slice %222 {offsets = [0, 128], sizes = [8, 128], strides = [1, 1]} : vector<8x384xf32> to vector<8x128xf32>
    %233 = arith.addf %231, %232 : vector<8x128xf32>
    %234 = arith.negf %233 : vector<8x128xf32>
    %235 = math.exp %234 : vector<8x128xf32>
    %cst_63 = arith.constant 1.000000e+00 : f32
    %236 = vector.broadcast %cst_63 : f32 to vector<8x128xf32>
    %237 = arith.addf %236, %235 : vector<8x128xf32>
    %238 = arith.divf %236, %237 : vector<8x128xf32>
    %239 = vector.extract_strided_slice %221 {offsets = [0, 256], sizes = [8, 128], strides = [1, 1]} : vector<8x384xf32> to vector<8x128xf32>
    %240 = vector.extract_strided_slice %222 {offsets = [0, 256], sizes = [8, 128], strides = [1, 1]} : vector<8x384xf32> to vector<8x128xf32>
    %241 = vector.broadcast %13 : vector<1x128xf32> to vector<8x128xf32>
    %242 = arith.addf %240, %241 : vector<8x128xf32>
    %243 = arith.mulf %230, %242 : vector<8x128xf32>
    %244 = arith.addf %239, %243 : vector<8x128xf32>
    %245 = math.tanh %244 : vector<8x128xf32>
    %246 = arith.subf %214, %245 : vector<8x128xf32>
    %247 = arith.mulf %238, %246 : vector<8x128xf32>
    %248 = arith.addf %245, %247 : vector<8x128xf32>
    %249 = arith.index_cast %c6_i32 : i32 to index
    %c0_64 = arith.constant 0 : index
    %c0_65 = arith.constant 0 : index
    %250 = vector.load %arg12[%249, %c0_64, %c0_65] : memref<8x8x128xf32, #tpu.memory_space<vmem>>, vector<1x8x128xf32>
    %251 = vector.shape_cast %250 : vector<1x8x128xf32> to vector<8x128xf32>
    %252 = vector.shape_cast %248 : vector<8x128xf32> to vector<1x8x128xf32>
    tpu.vector_store %arg12[%249, %c0_64, %c0_65], %252 {strides = array<i32>} : memref<8x8x128xf32, #tpu.memory_space<vmem>>, vector<1x8x128xf32>,
    %c7_i32 = arith.constant 7 : i32
    %253 = arith.index_cast %c7_i32 : i32 to index
    %c0_66 = arith.constant 0 : index
    %c0_67 = arith.constant 0 : index
    %254 = vector.load %arg11[%253, %c0_66, %c0_67] : memref<8x8x384xf32, #tpu.memory_space<vmem>>, vector<1x8x384xf32>
    %255 = vector.shape_cast %254 : vector<1x8x384xf32> to vector<8x384xf32>
    %cst_68 = arith.constant dense<0.000000e+00> : vector<8x384xf32>
    %256 = tpu.matmul %248, %12, %cst_68 {dimension_numbers = #tpu.dot_dimension_numbers<[1], [0], [0], [1], [0, 0, 1, 1], [], []>} : vector<8x128xf32>, vector<128x384xf32>, vector<8x384xf32> -> vector<8x384xf32>
    %257 = vector.extract_strided_slice %255 {offsets = [0, 0], sizes = [8, 128], strides = [1, 1]} : vector<8x384xf32> to vector<8x128xf32>
    %258 = vector.extract_strided_slice %256 {offsets = [0, 0], sizes = [8, 128], strides = [1, 1]} : vector<8x384xf32> to vector<8x128xf32>
    %259 = arith.addf %257, %258 : vector<8x128xf32>
    %260 = arith.negf %259 : vector<8x128xf32>
    %261 = math.exp %260 : vector<8x128xf32>
    %cst_69 = arith.constant 1.000000e+00 : f32
    %262 = vector.broadcast %cst_69 : f32 to vector<8x128xf32>
    %263 = arith.addf %262, %261 : vector<8x128xf32>
    %264 = arith.divf %262, %263 : vector<8x128xf32>
    %265 = vector.extract_strided_slice %255 {offsets = [0, 128], sizes = [8, 128], strides = [1, 1]} : vector<8x384xf32> to vector<8x128xf32>
    %266 = vector.extract_strided_slice %256 {offsets = [0, 128], sizes = [8, 128], strides = [1, 1]} : vector<8x384xf32> to vector<8x128xf32>
    %267 = arith.addf %265, %266 : vector<8x128xf32>
    %268 = arith.negf %267 : vector<8x128xf32>
    %269 = math.exp %268 : vector<8x128xf32>
    %cst_70 = arith.constant 1.000000e+00 : f32
    %270 = vector.broadcast %cst_70 : f32 to vector<8x128xf32>
    %271 = arith.addf %270, %269 : vector<8x128xf32>
    %272 = arith.divf %270, %271 : vector<8x128xf32>
    %273 = vector.extract_strided_slice %255 {offsets = [0, 256], sizes = [8, 128], strides = [1, 1]} : vector<8x384xf32> to vector<8x128xf32>
    %274 = vector.extract_strided_slice %256 {offsets = [0, 256], sizes = [8, 128], strides = [1, 1]} : vector<8x384xf32> to vector<8x128xf32>
    %275 = vector.broadcast %13 : vector<1x128xf32> to vector<8x128xf32>
    %276 = arith.addf %274, %275 : vector<8x128xf32>
    %277 = arith.mulf %264, %276 : vector<8x128xf32>
    %278 = arith.addf %273, %277 : vector<8x128xf32>
    %279 = math.tanh %278 : vector<8x128xf32>
    %280 = arith.subf %248, %279 : vector<8x128xf32>
    %281 = arith.mulf %272, %280 : vector<8x128xf32>
    %282 = arith.addf %279, %281 : vector<8x128xf32>
    %283 = arith.index_cast %c7_i32 : i32 to index
    %c0_71 = arith.constant 0 : index
    %c0_72 = arith.constant 0 : index
    %284 = vector.load %arg12[%283, %c0_71, %c0_72] : memref<8x8x128xf32, #tpu.memory_space<vmem>>, vector<1x8x128xf32>
    %285 = vector.shape_cast %284 : vector<1x8x128xf32> to vector<8x128xf32>
    %286 = vector.shape_cast %282 : vector<8x128xf32> to vector<1x8x128xf32>
    tpu.vector_store %arg12[%283, %c0_71, %c0_72], %286 {strides = array<i32>} : memref<8x8x128xf32, #tpu.memory_space<vmem>>, vector<1x8x128xf32>,
    %c8_i32 = arith.constant 8 : i32
    %c0_73 = arith.constant 0 : index
    %c0_74 = arith.constant 0 : index
    %287 = vector.load %arg10[%c0_73, %c0_74] : memref<8x128xf32, #tpu.memory_space<vmem>>, vector<8x128xf32>
    tpu.vector_store %arg10[%c0_73, %c0_74], %282 {strides = array<i32>} : memref<8x128xf32, #tpu.memory_space<vmem>>, vector<8x128xf32>,
    %c0_75 = arith.constant 0 : index
    %c0_76 = arith.constant 0 : index
    %c0_77 = arith.constant 0 : index
    %288 = vector.load %arg12[%c0_75, %c0_76, %c0_77] : memref<8x8x128xf32, #tpu.memory_space<vmem>>, vector<8x8x128xf32>
    %289 = vector.shape_cast %288 : vector<8x8x128xf32> to vector<64x128xf32>
    %c0_78 = arith.constant 0 : index
    %c0_79 = arith.constant 0 : index
    %290 = vector.load %arg7[%c0_78, %c0_79] : memref<128x128xf32, #tpu.memory_space<vmem>>, vector<128x128xf32>
    %cst_80 = arith.constant dense<0.000000e+00> : vector<64x128xf32>
    %291 = tpu.matmul %289, %290, %cst_80 {dimension_numbers = #tpu.dot_dimension_numbers<[1], [0], [0], [1], [0, 0, 1, 1], [], []>} : vector<64x128xf32>, vector<128x128xf32>, vector<64x128xf32> -> vector<64x128xf32>
    %c0_81 = arith.constant 0 : index
    %c0_82 = arith.constant 0 : index
    %292 = vector.load %arg8[%c0_81, %c0_82] : memref<1x128xf32, #tpu.memory_space<vmem>>, vector<1x128xf32>
    %293 = vector.broadcast %292 : vector<1x128xf32> to vector<64x128xf32>
    %294 = arith.addf %291, %293 : vector<64x128xf32>
    %295 = vector.shape_cast %294 : vector<64x128xf32> to vector<8x8x128xf32>
    %c0_83 = arith.constant 0 : index
    %c0_84 = arith.constant 0 : index
    %c0_85 = arith.constant 0 : index
    %296 = vector.load %arg9[%c0_83, %c0_84, %c0_85] : memref<8x8x128xf32, #tpu.memory_space<vmem>>, vector<8x8x128xf32>
    tpu.vector_store %arg9[%c0_83, %c0_84, %c0_85], %295 {strides = array<i32>} : memref<8x8x128xf32, #tpu.memory_space<vmem>>, vector<8x8x128xf32>,
    return
  }
  func.func @transform_0(%arg0: i32, %arg1: i32) -> (i32, i32, i32) {
    %c0_i32 = arith.constant 0 : i32
    %c0_i32_0 = arith.constant 0 : i32
    return %arg1, %arg0, %c0_i32 : i32, i32, i32
  }
  func.func @transform_1(%arg0: i32, %arg1: i32) -> (i32, i32) {
    %c0_i32 = arith.constant 0 : i32
    %c0_i32_0 = arith.constant 0 : i32
    %c0_i32_1 = arith.constant 0 : i32
    return %c0_i32, %c0_i32_0 : i32, i32
  }
  func.func @transform_2(%arg0: i32, %arg1: i32) -> (i32, i32) {
    %c0_i32 = arith.constant 0 : i32
    %c0_i32_0 = arith.constant 0 : i32
    %c0_i32_1 = arith.constant 0 : i32
    return %c0_i32, %c0_i32_0 : i32, i32
  }
  func.func @transform_3(%arg0: i32, %arg1: i32) -> (i32, i32) {
    %c0_i32 = arith.constant 0 : i32
    %c0_i32_0 = arith.constant 0 : i32
    %c0_i32_1 = arith.constant 0 : i32
    return %c0_i32, %c0_i32_0 : i32, i32
  }
  func.func @transform_4(%arg0: i32, %arg1: i32) -> (i32, i32) {
    %c0_i32 = arith.constant 0 : i32
    %c0_i32_0 = arith.constant 0 : i32
    %c0_i32_1 = arith.constant 0 : i32
    return %c0_i32, %c0_i32_0 : i32, i32
  }
  func.func @transform_5(%arg0: i32, %arg1: i32) -> (i32, i32) {
    %c0_i32 = arith.constant 0 : i32
    %c0_i32_0 = arith.constant 0 : i32
    %c0_i32_1 = arith.constant 0 : i32
    return %c0_i32, %c0_i32_0 : i32, i32
  }
  func.func @transform_6(%arg0: i32, %arg1: i32) -> (i32, i32) {
    %c0_i32 = arith.constant 0 : i32
    %c0_i32_0 = arith.constant 0 : i32
    %c0_i32_1 = arith.constant 0 : i32
    return %c0_i32, %c0_i32_0 : i32, i32
  }
  func.func @transform_7(%arg0: i32, %arg1: i32) -> (i32, i32, i32) {
    %c0_i32 = arith.constant 0 : i32
    %c0_i32_0 = arith.constant 0 : i32
    return %arg1, %arg0, %c0_i32 : i32, i32, i32
  }
}

</mosaic_0001>

<llo_original>
// kernel: phase_gru_forward.1
$region0: #{phase_gru_forward.1}
  #allocation0 [shape = 'u32[]', space=smem, size = 0x4, offset = 0x4, fixed_abs, tag = 'smem constant byte address 0x4 - core index']
  #allocation1 [shape = 'u32[144,128]{1,0:T(1,128)}', space=vmem, size = 0x12000, scoped, tag = 'internal scratch']
  #allocation2 [shape = 'f32[8,128]{1,0:T(8,128)}', space=vmem, size = 0x1000, scoped, tag = 'scratch operand']
  #allocation3 [shape = 'f32[8,8,384]{2,1,0:T(8,128)}', space=vmem, size = 0x18000, scoped, tag = 'scratch operand']
  #allocation4 [shape = 'f32[8,8,128]{2,1,0:T(8,128)}', space=vmem, size = 0x8000, scoped, tag = 'scratch operand']
  %s0 = inlined_call_operand.vmem [shape: f32[8,8,64], index: 0, kind: input, shape index: {}]
  %s1 = inlined_call_operand.vmem [shape: f32[64,384], index: 1, kind: input, shape index: {}]
  %s2 = inlined_call_operand.vmem [shape: f32[128,384], index: 2, kind: input, shape index: {}]
  %s3 = inlined_call_operand.vmem [shape: f32[1,384], index: 3, kind: input, shape index: {}]
  %s4 = inlined_call_operand.vmem [shape: f32[1,128], index: 4, kind: input, shape index: {}]
  %s5 = inlined_call_operand.vmem [shape: f32[128,128], index: 5, kind: input, shape index: {}]
  %s6 = inlined_call_operand.vmem [shape: f32[1,128], index: 6, kind: input, shape index: {}]
  %s7 = inlined_call_operand.vmem [shape: f32[8,8,128], index: 7, kind: output, shape index: {}]
  %s8 = sld [smem:[#allocation0]]
  $region42: #{phase_gru_forward.1} parent=0
    _
  %s10 = ssub.s32 1, %s8
  %s11 = scalar_select 0, %s10, %s8
  // Predicated region
  $region2: #{phase_gru_forward.1} parent=0 // pred_check
    _
  $region3: #{phase_gru_forward.1} parent=0 // pred_check_branch
    %13 = sbr.rel (0) target = $region5
  $region4: #{phase_gru_forward.1} parent=0 // pred_region
    _
  $region5: #{phase_gru_forward.1} parent=0 // pred_fallthru
    _
  // Predicated region
  $region6: #{phase_gru_forward.1} parent=0 // pred_check
    _
  $region7: #{phase_gru_forward.1} parent=0 // pred_check_branch
    %15 = sbr.rel (0) target = $region9
  $region8: #{phase_gru_forward.1} parent=0 // pred_region
    _
  $region9: #{phase_gru_forward.1} parent=0 // pred_fallthru
    _
  // Predicated region
  $region10: #{phase_gru_forward.1} parent=0 // pred_check
    _
  $region11: #{phase_gru_forward.1} parent=0 // pred_check_branch
    %17 = sbr.rel (0) target = $region13
  $region12: #{phase_gru_forward.1} parent=0 // pred_region
    _
  $region13: #{phase_gru_forward.1} parent=0 // pred_fallthru
    _
  // Predicated region
  $region14: #{phase_gru_forward.1} parent=0 // pred_check
    _
  $region15: #{phase_gru_forward.1} parent=0 // pred_check_branch
    %19 = sbr.rel (0) target = $region17
  $region16: #{phase_gru_forward.1} parent=0 // pred_region
    _
  $region17: #{phase_gru_forward.1} parent=0 // pred_fallthru
    _
  // Predicated region
  $region18: #{phase_gru_forward.1} parent=0 // pred_check
    _
  $region19: #{phase_gru_forward.1} parent=0 // pred_check_branch
    %21 = sbr.rel (0) target = $region21
  $region20: #{phase_gru_forward.1} parent=0 // pred_region
    _
  $region21: #{phase_gru_forward.1} parent=0 // pred_fallthru
    _
  // Predicated region
  $region22: #{phase_gru_forward.1} parent=0 // pred_check
    _
  $region23: #{phase_gru_forward.1} parent=0 // pred_check_branch
    %23 = sbr.rel (0) target = $region25
  $region24: #{phase_gru_forward.1} parent=0 // pred_region
    _
  $region25: #{phase_gru_forward.1} parent=0 // pred_fallthru
    _
  // Predicated region
  $region26: #{phase_gru_forward.1} parent=0 // pred_check
    _
  $region27: #{phase_gru_forward.1} parent=0 // pred_check_branch
    %25 = sbr.rel (0) target = $region29
  $region28: #{phase_gru_forward.1} parent=0 // pred_region
    _
  $region29: #{phase_gru_forward.1} parent=0 // pred_fallthru
    _
  %p26 = scmp.eq.s32.totalorder 0, 0
  // Predicated region
  $region30: #{phase_gru_forward.1} parent=0 // pred_check
    %p27 = pneg %p26
  $region31: #{phase_gru_forward.1} parent=0 // pred_check_branch
    %29 = sbr.rel (%p27) target = $region33
  $region32: #{phase_gru_forward.1} parent=0 // pred_region
    %30 = vst [vmem:[#allocation2] sm:$0xff] 0.0
  $region33: #{phase_gru_forward.1} parent=0 // pred_fallthru
    _
  %v31 = vld [vmem:[%s0] sm:$0xff]
  %v32 = vld [vmem:[%s0 + $0x8] sm:$0xff]
  %v33 = vld [vmem:[%s0 + $0x10] sm:$0xff]
  %v34 = vld [vmem:[%s0 + $0x18] sm:$0xff]
  %v35 = vld [vmem:[%s0 + $0x20] sm:$0xff]
  %v36 = vld [vmem:[%s0 + $0x28] sm:$0xff]
  %v37 = vld [vmem:[%s0 + $0x30] sm:$0xff]
  %v38 = vld [vmem:[%s0 + $0x38] sm:$0xff]
  %v39 = vld [vmem:[%s1] sm:$0xff]
  %v40 = vld [vmem:[%s1 + $0x8] sm:$0xff]
  %v41 = vld [vmem:[%s1 + $0x10] sm:$0xff]
  %v42 = vld [vmem:[%s1 + $0x18] sm:$0xff]
  %v43 = vld [vmem:[%s1 + $0x20] sm:$0xff]
  %v44 = vld [vmem:[%s1 + $0x28] sm:$0xff]
  %v45 = vld [vmem:[%s1 + $0x30] sm:$0xff]
  %v46 = vld [vmem:[%s1 + $0x38] sm:$0xff]
  %v47 = vld [vmem:[%s1 + $0x40] sm:$0xff]
  %v48 = vld [vmem:[%s1 + $0x48] sm:$0xff]
  %v49 = vld [vmem:[%s1 + $0x50] sm:$0xff]
  %v50 = vld [vmem:[%s1 + $0x58] sm:$0xff]
  %v51 = vld [vmem:[%s1 + $0x60] sm:$0xff]
  %v52 = vld [vmem:[%s1 + $0x68] sm:$0xff]
  %v53 = vld [vmem:[%s1 + $0x70] sm:$0xff]
  %v54 = vld [vmem:[%s1 + $0x78] sm:$0xff]
  %v55 = vld [vmem:[%s1 + $0x80] sm:$0xff]
  %v56 = vld [vmem:[%s1 + $0x88] sm:$0xff]
  %v57 = vld [vmem:[%s1 + $0x90] sm:$0xff]
  %v58 = vld [vmem:[%s1 + $0x98] sm:$0xff]
  %v59 = vld [vmem:[%s1 + $0xa0] sm:$0xff]
  %v60 = vld [vmem:[%s1 + $0xa8] sm:$0xff]
  %v61 = vld [vmem:[%s1 + $0xb0] sm:$0xff]
  %v62 = vld [vmem:[%s1 + $0xb8] sm:$0xff]
  %v63 = vld [vmem:[%s3] sm:$0x7]
  %v65 = vlaneseq
  %v66 = vshrl.u32 %v65, 7
  %v67 = vsub.s32 0, %v66
  %v68 = vrot.slane %v63, %v67
  %v69 = vlaneseq
  %v70 = vshrl.u32 %v69, 7
  %v71 = vsub.s32 1, %v70
  %v72 = vrot.slane %v63, %v71
  %v73 = vlaneseq
  %v74 = vshrl.u32 %v73, 7
  %v75 = vsub.s32 2, %v74
  %v76 = vrot.slane %v63, %v75
  %vm80 = vcmask 523264
  %v82 = vsel %vm80, %v31, 0
  %v85 = vsel %vm80, %v32, 0
  %v88 = vsel %vm80, %v33, 0
  %v91 = vsel %vm80, %v34, 0
  %v94 = vsel %vm80, %v35, 0
  %v97 = vsel %vm80, %v36, 0
  %v100 = vsel %vm80, %v37, 0
  %v103 = vsel %vm80, %v38, 0
  %105 = vmatprep.subr.mxu0 0.0
  %106 = vmatpush1.msra.mxu0 0.0
  %107 = vmatprep.subr.mxu0 0.0
  %108 = vmatpush1.msra.mxu0 0.0
  %109 = vmatprep.subr.mxu0 0.0
  %110 = vmatpush1.msra.mxu0 0.0
  %111 = vmatprep.subr.mxu0 0.0
  %112 = vmatpush1.msra.mxu0 0.0
  %113 = vmatprep.subr.mxu0 0.0
  %114 = vmatpush1.msra.mxu0 0.0
  %115 = vmatprep.subr.mxu0 0.0
  %116 = vmatpush1.msra.mxu0 0.0
  %117 = vmatprep.subr.mxu0 0.0
  %118 = vmatpush1.msra.mxu0 0.0
  %119 = vmatprep.subr.mxu0 0.0
  %120 = vmatpush1.msra.mxu0 0.0
  %121 = vmatprep.subr.mxu0 %v61
  %122 = vmatpush1.msra.mxu0 %v60
  %123 = vmatprep.subr.mxu0 %v58
  %124 = vmatpush1.msra.mxu0 %v57
  %125 = vmatprep.subr.mxu0 %v55
  %126 = vmatpush1.msra.mxu0 %v54
  %127 = vmatprep.subr.mxu0 %v52
  %128 = vmatpush1.msra.mxu0 %v51
  %129 = vmatprep.subr.mxu0 %v49
  %130 = vmatpush1.msra.mxu0 %v48
  %131 = vmatprep.subr.mxu0 %v46
  %132 = vmatpush1.msra.mxu0 %v45
  %133 = vmatprep.subr.mxu0 %v43
  %134 = vmatpush1.msra.mxu0 %v42
  %135 = vmatprep.subr.mxu0 %v40
  %136 = vmatpush1.msra.mxu0 %v39
  %137 = vmatprep.subr.mxu0 0.0
  %138 = vmatpush2.msra.mxu0 0.0
  %139 = vmatprep.subr.mxu0 0.0
  %140 = vmatpush2.msra.mxu0 0.0
  %141 = vmatprep.subr.mxu0 0.0
  %142 = vmatpush2.msra.mxu0 0.0
  %143 = vmatprep.subr.mxu0 0.0
  %144 = vmatpush2.msra.mxu0 0.0
  %145 = vmatprep.subr.mxu0 0.0
  %146 = vmatpush2.msra.mxu0 0.0
  %147 = vmatprep.subr.mxu0 0.0
  %148 = vmatpush2.msra.mxu0 0.0
  %149 = vmatprep.subr.mxu0 0.0
  %150 = vmatpush2.msra.mxu0 0.0
  %151 = vmatprep.subr.mxu0 0.0
  %152 = vmatpush2.msra.mxu0 0.0
  %153 = vmatprep.subr.mxu0 0.0
  %154 = vmatpush2.msra.mxu0 0.0
  %155 = vmatprep.subr.mxu0 0.0
  %156 = vmatpush2.msra.mxu0 0.0
  %157 = vmatprep.subr.mxu0 0.0
  %158 = vmatpush2.msra.mxu0 0.0
  %159 = vmatprep.subr.mxu0 0.0
  %160 = vmatpush2.msra.mxu0 0.0
  %161 = vmatprep.subr.mxu0 0.0
  %162 = vmatpush2.msra.mxu0 0.0
  %163 = vmatprep.subr.mxu0 0.0
  %164 = vmatpush2.msra.mxu0 0.0
  %165 = vmatprep.subr.mxu0 0.0
  %166 = vmatpush2.msra.mxu0 0.0
  %167 = vmatprep.subr.mxu0 0.0
  %168 = vmatpush2.msra.mxu0 0.0
  %169 = vmatprep.mubr.f32.mxu0 0.0
  %170 = vmatmul.mubr.f32.gmra.mxu0 %v82
  %v171 = vpop.f32.mrf.mxu0
  %v172 = vadd.f32 %v68, %v171
  %v173 = vpop.f32.mrf.mxu0
  %v174 = vadd.f32 %v72, %v173
  %175 = vmatprep.mubr.f32.mxu0 0.0
  %176 = vmatmul.mubr.f32.gmra.mxu0 %v85
  %v177 = vpop.f32.mrf.mxu0
  %v178 = vadd.f32 %v68, %v177
  %v179 = vpop.f32.mrf.mxu0
  %v180 = vadd.f32 %v72, %v179
  %181 = vmatprep.mubr.f32.mxu0 0.0
  %182 = vmatmul.mubr.f32.gmra.mxu0 %v88
  %v183 = vpop.f32.mrf.mxu0
  %v184 = vadd.f32 %v68, %v183
  %v185 = vpop.f32.mrf.mxu0
  %v186 = vadd.f32 %v72, %v185
  %187 = vmatprep.mubr.f32.mxu0 0.0
  %188 = vmatmul.mubr.f32.gmra.mxu0 %v91
  %v189 = vpop.f32.mrf.mxu0
  %v190 = vadd.f32 %v68, %v189
  %v191 = vpop.f32.mrf.mxu0
  %v192 = vadd.f32 %v72, %v191
  %193 = vmatprep.mubr.f32.mxu0 0.0
  %194 = vmatmul.mubr.f32.gmra.mxu0 %v94
  %v195 = vpop.f32.mrf.mxu0
  %v196 = vadd.f32 %v68, %v195
  %v197 = vpop.f32.mrf.mxu0
  %v198 = vadd.f32 %v72, %v197
  %199 = vmatprep.mubr.f32.mxu0 0.0
  %200 = vmatmul.mubr.f32.gmra.mxu0 %v97
  %v201 = vpop.f32.mrf.mxu0
  %v202 = vadd.f32 %v68, %v201
  %v203 = vpop.f32.mrf.mxu0
  %v204 = vadd.f32 %v72, %v203
  %205 = vmatprep.mubr.f32.mxu0 0.0
  %206 = vmatmul.mubr.f32.gmra.mxu0 %v100
  %v207 = vpop.f32.mrf.mxu0
  %v208 = vadd.f32 %v68, %v207
  %v209 = vpop.f32.mrf.mxu0
  %v210 = vadd.f32 %v72, %v209
  %211 = vmatprep.mubr.f32.mxu0 0.0
  %212 = vmatmul.mubr.f32.gmra.mxu0 %v103
  %v213 = vpop.f32.mrf.mxu0
  %v214 = vadd.f32 %v68, %v213
  %v215 = vpop.f32.mrf.mxu0
  %v216 = vadd.f32 %v72, %v215
  %217 = vdwg.mxu0
  %218 = vmatprep.subr.mxu0 0.0
  %219 = vmatpush1.msra.mxu0 0.0
  %220 = vmatprep.subr.mxu0 0.0
  %221 = vmatpush1.msra.mxu0 0.0
  %222 = vmatprep.subr.mxu0 0.0
  %223 = vmatpush1.msra.mxu0 0.0
  %224 = vmatprep.subr.mxu0 0.0
  %225 = vmatpush1.msra.mxu0 0.0
  %226 = vmatprep.subr.mxu0 0.0
  %227 = vmatpush1.msra.mxu0 0.0
  %228 = vmatprep.subr.mxu0 0.0
  %229 = vmatpush1.msra.mxu0 0.0
  %230 = vmatprep.subr.mxu0 0.0
  %231 = vmatpush1.msra.mxu0 0.0
  %232 = vmatprep.subr.mxu0 0.0
  %233 = vmatpush1.msra.mxu0 0.0
  %234 = vmatprep.subr.mxu0 0.0
  %235 = vmatpush1.msra.mxu0 %v62
  %236 = vmatprep.subr.mxu0 0.0
  %237 = vmatpush1.msra.mxu0 %v59
  %238 = vmatprep.subr.mxu0 0.0
  %239 = vmatpush1.msra.mxu0 %v56
  %240 = vmatprep.subr.mxu0 0.0
  %241 = vmatpush1.msra.mxu0 %v53
  %242 = vmatprep.subr.mxu0 0.0
  %243 = vmatpush1.msra.mxu0 %v50
  %244 = vmatprep.subr.mxu0 0.0
  %245 = vmatpush1.msra.mxu0 %v47
  %246 = vmatprep.subr.mxu0 0.0
  %247 = vmatpush1.msra.mxu0 %v44
  %248 = vmatprep.subr.mxu0 0.0
  %249 = vmatpush1.msra.mxu0 %v41
  %250 = vmatprep.subr.mxu0 0.0
  %251 = vmatpush2.msra.mxu0 0.0
  %252 = vmatprep.subr.mxu0 0.0
  %253 = vmatpush2.msra.mxu0 0.0
  %254 = vmatprep.subr.mxu0 0.0
  %255 = vmatpush2.msra.mxu0 0.0
  %256 = vmatprep.subr.mxu0 0.0
  %257 = vmatpush2.msra.mxu0 0.0
  %258 = vmatprep.subr.mxu0 0.0
  %259 = vmatpush2.msra.mxu0 0.0
  %260 = vmatprep.subr.mxu0 0.0
  %261 = vmatpush2.msra.mxu0 0.0
  %262 = vmatprep.subr.mxu0 0.0
  %263 = vmatpush2.msra.mxu0 0.0
  %264 = vmatprep.subr.mxu0 0.0
  %265 = vmatpush2.msra.mxu0 0.0
  %266 = vmatprep.subr.mxu0 0.0
  %267 = vmatpush2.msra.mxu0 0.0
  %268 = vmatprep.subr.mxu0 0.0
  %269 = vmatpush2.msra.mxu0 0.0
  %270 = vmatprep.subr.mxu0 0.0
  %271 = vmatpush2.msra.mxu0 0.0
  %272 = vmatprep.subr.mxu0 0.0
  %273 = vmatpush2.msra.mxu0 0.0
  %274 = vmatprep.subr.mxu0 0.0
  %275 = vmatpush2.msra.mxu0 0.0
  %276 = vmatprep.subr.mxu0 0.0
  %277 = vmatpush2.msra.mxu0 0.0
  %278 = vmatprep.subr.mxu0 0.0
  %279 = vmatpush2.msra.mxu0 0.0
  %280 = vmatprep.subr.mxu0 0.0
  %281 = vmatpush2.msra.mxu0 0.0
  %282 = vmatprep.mubr.f32.mxu0 0.0
  %283 = vmatmul.mubr.f32.gmra.mxu0 %v82
  %v284 = vpop.f32.mrf.mxu0
  %v285 = vadd.f32 %v76, %v284
  %v286 = vpop.f32.mrf.mxu0
  %287 = vmatprep.mubr.f32.mxu0 0.0
  %288 = vmatmul.mubr.f32.gmra.mxu0 %v85
  %v289 = vpop.f32.mrf.mxu0
  %v290 = vadd.f32 %v76, %v289
  %v291 = vpop.f32.mrf.mxu0
  %292 = vmatprep.mubr.f32.mxu0 0.0
  %293 = vmatmul.mubr.f32.gmra.mxu0 %v88
  %v294 = vpop.f32.mrf.mxu0
  %v295 = vadd.f32 %v76, %v294
  %v296 = vpop.f32.mrf.mxu0
  %297 = vmatprep.mubr.f32.mxu0 0.0
  %298 = vmatmul.mubr.f32.gmra.mxu0 %v91
  %v299 = vpop.f32.mrf.mxu0
  %v300 = vadd.f32 %v76, %v299
  %v301 = vpop.f32.mrf.mxu0
  %302 = vmatprep.mubr.f32.mxu0 0.0
  %303 = vmatmul.mubr.f32.gmra.mxu0 %v94
  %v304 = vpop.f32.mrf.mxu0
  %v305 = vadd.f32 %v76, %v304
  %v306 = vpop.f32.mrf.mxu0
  %307 = vmatprep.mubr.f32.mxu0 0.0
  %308 = vmatmul.mubr.f32.gmra.mxu0 %v97
  %v309 = vpop.f32.mrf.mxu0
  %v310 = vadd.f32 %v76, %v309
  %v311 = vpop.f32.mrf.mxu0
  %312 = vmatprep.mubr.f32.mxu0 0.0
  %313 = vmatmul.mubr.f32.gmra.mxu0 %v100
  %v314 = vpop.f32.mrf.mxu0
  %v315 = vadd.f32 %v76, %v314
  %v316 = vpop.f32.mrf.mxu0
  %317 = vmatprep.mubr.f32.mxu0 0.0
  %318 = vmatmul.mubr.f32.gmra.mxu0 %v103
  %v319 = vpop.f32.mrf.mxu0
  %v320 = vadd.f32 %v76, %v319
  %v321 = vpop.f32.mrf.mxu0
  %322 = vdwg.mxu0
  %323 = vst [vmem:[#allocation3] sm:$0xff] %v172
  %324 = vst [vmem:[#allocation3 + $0x8] sm:$0xff] %v174
  %325 = vst [vmem:[#allocation3 + $0x10] sm:$0xff] %v285
  %326 = vst [vmem:[#allocation3 + $0x18] sm:$0xff] %v178
  %327 = vst [vmem:[#allocation3 + $0x20] sm:$0xff] %v180
  %328 = vst [vmem:[#allocation3 + $0x28] sm:$0xff] %v290
  %329 = vst [vmem:[#allocation3 + $0x30] sm:$0xff] %v184
  %330 = vst [vmem:[#allocation3 + $0x38] sm:$0xff] %v186
  %331 = vst [vmem:[#allocation3 + $0x40] sm:$0xff] %v295
  %332 = vst [vmem:[#allocation3 + $0x48] sm:$0xff] %v190
  %333 = vst [vmem:[#allocation3 + $0x50] sm:$0xff] %v192
  %334 = vst [vmem:[#allocation3 + $0x58] sm:$0xff] %v300
  %335 = vst [vmem:[#allocation3 + $0x60] sm:$0xff] %v196
  %336 = vst [vmem:[#allocation3 + $0x68] sm:$0xff] %v198
  %337 = vst [vmem:[#allocation3 + $0x70] sm:$0xff] %v305
  %338 = vst [vmem:[#allocation3 + $0x78] sm:$0xff] %v202
  %339 = vst [vmem:[#allocation3 + $0x80] sm:$0xff] %v204
  %340 = vst [vmem:[#allocation3 + $0x88] sm:$0xff] %v310
  %341 = vst [vmem:[#allocation3 + $0x90] sm:$0xff] %v208
  %342 = vst [vmem:[#allocation3 + $0x98] sm:$0xff] %v210
  %343 = vst [vmem:[#allocation3 + $0xa0] sm:$0xff] %v315
  %344 = vst [vmem:[#allocation3 + $0xa8] sm:$0xff] %v214
  %345 = vst [vmem:[#allocation3 + $0xb0] sm:$0xff] %v216
  %346 = vst [vmem:[#allocation3 + $0xb8] sm:$0xff] %v320
  %v347 = vld [vmem:[%s2] sm:$0xff]
  %v348 = vld [vmem:[%s2 + $0x8] sm:$0xff]
  %v349 = vld [vmem:[%s2 + $0x10] sm:$0xff]
  %v350 = vld [vmem:[%s2 + $0x18] sm:$0xff]
  %v351 = vld [vmem:[%s2 + $0x20] sm:$0xff]
  %v352 = vld [vmem:[%s2 + $0x28] sm:$0xff]
  %v353 = vld [vmem:[%s2 + $0x30] sm:$0xff]
  %v354 = vld [vmem:[%s2 + $0x38] sm:$0xff]
  %v355 = vld [vmem:[%s2 + $0x40] sm:$0xff]
  %v356 = vld [vmem:[%s2 + $0x48] sm:$0xff]
  %v357 = vld [vmem:[%s2 + $0x50] sm:$0xff]
  %v358 = vld [vmem:[%s2 + $0x58] sm:$0xff]
  %v359 = vld [vmem:[%s2 + $0x60] sm:$0xff]
  %v360 = vld [vmem:[%s2 + $0x68] sm:$0xff]
  %v361 = vld [vmem:[%s2 + $0x70] sm:$0xff]
  %v362 = vld [vmem:[%s2 + $0x78] sm:$0xff]
  %v363 = vld [vmem:[%s2 + $0x80] sm:$0xff]
  %v364 = vld [vmem:[%s2 + $0x88] sm:$0xff]
  %v365 = vld [vmem:[%s2 + $0x90] sm:$0xff]
  %v366 = vld [vmem:[%s2 + $0x98] sm:$0xff]
  %v367 = vld [vmem:[%s2 + $0xa0] sm:$0xff]
  %v368 = vld [vmem:[%s2 + $0xa8] sm:$0xff]
  %v369 = vld [vmem:[%s2 + $0xb0] sm:$0xff]
  %v370 = vld [vmem:[%s2 + $0xb8] sm:$0xff]
  %v371 = vld [vmem:[%s2 + $0xc0] sm:$0xff]
  %v372 = vld [vmem:[%s2 + $0xc8] sm:$0xff]
  %v373 = vld [vmem:[%s2 + $0xd0] sm:$0xff]
  %v374 = vld [vmem:[%s2 + $0xd8] sm:$0xff]
  %v375 = vld [vmem:[%s2 + $0xe0] sm:$0xff]
  %v376 = vld [vmem:[%s2 + $0xe8] sm:$0xff]
  %v377 = vld [vmem:[%s2 + $0xf0] sm:$0xff]
  %v378 = vld [vmem:[%s2 + $0xf8] sm:$0xff]
  %v379 = vld [vmem:[%s2 + $0x100] sm:$0xff]
  %v380 = vld [vmem:[%s2 + $0x108] sm:$0xff]
  %v381 = vld [vmem:[%s2 + $0x110] sm:$0xff]
  %v382 = vld [vmem:[%s2 + $0x118] sm:$0xff]
  %v383 = vld [vmem:[%s2 + $0x120] sm:$0xff]
  %v384 = vld [vmem:[%s2 + $0x128] sm:$0xff]
  %v385 = vld [vmem:[%s2 + $0x130] sm:$0xff]
  %v386 = vld [vmem:[%s2 + $0x138] sm:$0xff]
  %v387 = vld [vmem:[%s2 + $0x140] sm:$0xff]
  %v388 = vld [vmem:[%s2 + $0x148] sm:$0xff]
  %v389 = vld [vmem:[%s2 + $0x150] sm:$0xff]
  %v390 = vld [vmem:[%s2 + $0x158] sm:$0xff]
  %v391 = vld [vmem:[%s2 + $0x160] sm:$0xff]
  %v392 = vld [vmem:[%s2 + $0x168] sm:$0xff]
  %v393 = vld [vmem:[%s2 + $0x170] sm:$0xff]
  %v394 = vld [vmem:[%s2 + $0x178] sm:$0xff]
  %v395 = vld [vmem:[%s4] sm:$0x1]
  %v396 = vld [vmem:[#allocation2] sm:$0xff]
  %v397 = vld [vmem:[#allocation3] sm:$0xff]
  %v398 = vld [vmem:[#allocation3 + $0x8] sm:$0xff]
  %v399 = vld [vmem:[#allocation3 + $0x10] sm:$0xff]
  %400 = vmatprep.subr.mxu0 %v393
  %401 = vmatpush1.msra.mxu0 %v392
  %402 = vmatprep.subr.mxu0 %v390
  %403 = vmatpush1.msra.mxu0 %v389
  %404 = vmatprep.subr.mxu0 %v387
  %405 = vmatpush1.msra.mxu0 %v386
  %406 = vmatprep.subr.mxu0 %v384
  %407 = vmatpush1.msra.mxu0 %v383
  %408 = vmatprep.subr.mxu0 %v381
  %409 = vmatpush1.msra.mxu0 %v380
  %410 = vmatprep.subr.mxu0 %v378
  %411 = vmatpush1.msra.mxu0 %v377
  %412 = vmatprep.subr.mxu0 %v375
  %413 = vmatpush1.msra.mxu0 %v374
  %414 = vmatprep.subr.mxu0 %v372
  %415 = vmatpush1.msra.mxu0 %v371
  %416 = vmatprep.subr.mxu0 %v369
  %417 = vmatpush1.msra.mxu0 %v368
  %418 = vmatprep.subr.mxu0 %v366
  %419 = vmatpush1.msra.mxu0 %v365
  %420 = vmatprep.subr.mxu0 %v363
  %421 = vmatpush1.msra.mxu0 %v362
  %422 = vmatprep.subr.mxu0 %v360
  %423 = vmatpush1.msra.mxu0 %v359
  %424 = vmatprep.subr.mxu0 %v357
  %425 = vmatpush1.msra.mxu0 %v356
  %426 = vmatprep.subr.mxu0 %v354
  %427 = vmatpush1.msra.mxu0 %v353
  %428 = vmatprep.subr.mxu0 %v351
  %429 = vmatpush1.msra.mxu0 %v350
  %430 = vmatprep.subr.mxu0 %v348
  %431 = vmatpush1.msra.mxu0 %v347
  %432 = vmatprep.subr.mxu0 0.0
  %433 = vmatpush2.msra.mxu0 0.0
  %434 = vmatprep.subr.mxu0 0.0
  %435 = vmatpush2.msra.mxu0 0.0
  %436 = vmatprep.subr.mxu0 0.0
  %437 = vmatpush2.msra.mxu0 0.0
  %438 = vmatprep.subr.mxu0 0.0
  %439 = vmatpush2.msra.mxu0 0.0
  %440 = vmatprep.subr.mxu0 0.0
  %441 = vmatpush2.msra.mxu0 0.0
  %442 = vmatprep.subr.mxu0 0.0
  %443 = vmatpush2.msra.mxu0 0.0
  %444 = vmatprep.subr.mxu0 0.0
  %445 = vmatpush2.msra.mxu0 0.0
  %446 = vmatprep.subr.mxu0 0.0
  %447 = vmatpush2.msra.mxu0 0.0
  %448 = vmatprep.subr.mxu0 0.0
  %449 = vmatpush2.msra.mxu0 0.0
  %450 = vmatprep.subr.mxu0 0.0
  %451 = vmatpush2.msra.mxu0 0.0
  %452 = vmatprep.subr.mxu0 0.0
  %453 = vmatpush2.msra.mxu0 0.0
  %454 = vmatprep.subr.mxu0 0.0
  %455 = vmatpush2.msra.mxu0 0.0
  %456 = vmatprep.subr.mxu0 0.0
  %457 = vmatpush2.msra.mxu0 0.0
  %458 = vmatprep.subr.mxu0 0.0
  %459 = vmatpush2.msra.mxu0 0.0
  %460 = vmatprep.subr.mxu0 0.0
  %461 = vmatpush2.msra.mxu0 0.0
  %462 = vmatprep.subr.mxu0 0.0
  %463 = vmatpush2.msra.mxu0 0.0
  %464 = vmatprep.mubr.f32.mxu0 0.0
  %465 = vmatmul.mubr.f32.gmra.mxu0 %v396
  %v466 = vpop.f32.mrf.mxu0
  %v467 = vadd.f32 0.0, %v466
  %v468 = vpop.f32.mrf.mxu0
  %v469 = vadd.f32 0.0, %v468
  %470 = vdwg.mxu0
  %471 = vmatprep.subr.mxu0 0.0
  %472 = vmatpush1.msra.mxu0 %v394
  %473 = vmatprep.subr.mxu0 0.0
  %474 = vmatpush1.msra.mxu0 %v391
  %475 = vmatprep.subr.mxu0 0.0
  %476 = vmatpush1.msra.mxu0 %v388
  %477 = vmatprep.subr.mxu0 0.0
  %478 = vmatpush1.msra.mxu0 %v385
  %479 = vmatprep.subr.mxu0 0.0
  %480 = vmatpush1.msra.mxu0 %v382
  %481 = vmatprep.subr.mxu0 0.0
  %482 = vmatpush1.msra.mxu0 %v379
  %483 = vmatprep.subr.mxu0 0.0
  %484 = vmatpush1.msra.mxu0 %v376
  %485 = vmatprep.subr.mxu0 0.0
  %486 = vmatpush1.msra.mxu0 %v373
  %487 = vmatprep.subr.mxu0 0.0
  %488 = vmatpush1.msra.mxu0 %v370
  %489 = vmatprep.subr.mxu0 0.0
  %490 = vmatpush1.msra.mxu0 %v367
  %491 = vmatprep.subr.mxu0 0.0
  %492 = vmatpush1.msra.mxu0 %v364
  %493 = vmatprep.subr.mxu0 0.0
  %494 = vmatpush1.msra.mxu0 %v361
  %495 = vmatprep.subr.mxu0 0.0
  %496 = vmatpush1.msra.mxu0 %v358
  %497 = vmatprep.subr.mxu0 0.0
  %498 = vmatpush1.msra.mxu0 %v355
  %499 = vmatprep.subr.mxu0 0.0
  %500 = vmatpush1.msra.mxu0 %v352
  %501 = vmatprep.subr.mxu0 0.0
  %502 = vmatpush1.msra.mxu0 %v349
  %503 = vmatprep.subr.mxu0 0.0
  %504 = vmatpush2.msra.mxu0 0.0
  %505 = vmatprep.subr.mxu0 0.0
  %506 = vmatpush2.msra.mxu0 0.0
  %507 = vmatprep.subr.mxu0 0.0
  %508 = vmatpush2.msra.mxu0 0.0
  %509 = vmatprep.subr.mxu0 0.0
  %510 = vmatpush2.msra.mxu0 0.0
  %511 = vmatprep.subr.mxu0 0.0
  %512 = vmatpush2.msra.mxu0 0.0
  %513 = vmatprep.subr.mxu0 0.0
  %514 = vmatpush2.msra.mxu0 0.0
  %515 = vmatprep.subr.mxu0 0.0
  %516 = vmatpush2.msra.mxu0 0.0
  %517 = vmatprep.subr.mxu0 0.0
  %518 = vmatpush2.msra.mxu0 0.0
  %519 = vmatprep.subr.mxu0 0.0
  %520 = vmatpush2.msra.mxu0 0.0
  %521 = vmatprep.subr.mxu0 0.0
  %522 = vmatpush2.msra.mxu0 0.0
  %523 = vmatprep.subr.mxu0 0.0
  %524 = vmatpush2.msra.mxu0 0.0
  %525 = vmatprep.subr.mxu0 0.0
  %526 = vmatpush2.msra.mxu0 0.0
  %527 = vmatprep.subr.mxu0 0.0
  %528 = vmatpush2.msra.mxu0 0.0
  %529 = vmatprep.subr.mxu0 0.0
  %530 = vmatpush2.msra.mxu0 0.0
  %531 = vmatprep.subr.mxu0 0.0
  %532 = vmatpush2.msra.mxu0 0.0
  %533 = vmatprep.subr.mxu0 0.0
  %534 = vmatpush2.msra.mxu0 0.0
  %535 = vmatprep.mubr.f32.mxu0 0.0
  %536 = vmatmul.mubr.f32.gmra.mxu0 %v396
  %v537 = vpop.f32.mrf.mxu0
  %v538 = vadd.f32 0.0, %v537
  %v539 = vpop.f32.mrf.mxu0
  %540 = vdwg.mxu0
  %v541 = vadd.f32 %v397, %v467
  %v542 = vxor.u32 %v541, 2147483648
  %v543 = vmul.f32 %v542, 1.442695
  %v544 = vpow.pop %v543
  %v545 = vadd.f32 %v544, 1.0
  %v546 = vrcp.pop %v545
  %v547 = vmul.f32 1.0, %v546
  %v548 = vadd.f32 %v398, %v469
  %v549 = vxor.u32 %v548, 2147483648
  %v550 = vmul.f32 %v549, 1.442695
  %v551 = vpow.pop %v550
  %v552 = vadd.f32 %v551, 1.0
  %v553 = vrcp.pop %v552
  %v554 = vmul.f32 1.0, %v553
  %v556 = vlaneseq
  %v557 = vshrl.u32 %v556, 7
  %v558 = vsub.s32 0, %v557
  %v559 = vrot.slane %v395, %v558
  %v561 = vadd.f32 %v538, %v559
  %v562 = vmul.f32 %v547, %v561
  %v563 = vadd.f32 %v399, %v562
  %v564 = vtanh.pop %v563
  %v565 = vsub.f32 %v396, %v564
  %v566 = vmul.f32 %v554, %v565
  %v567 = vadd.f32 %v564, %v566
  %568 = vst [vmem:[#allocation4] sm:$0xff] %v567
  %s569 = scalar_lea.vmem [#allocation3], 24
  %v570 = vld [vmem:[%s569] sm:$0xff]
  %v571 = vld [vmem:[%s569 + $0x8] sm:$0xff]
  %v572 = vld [vmem:[%s569 + $0x10] sm:$0xff]
  %573 = vmatprep.subr.mxu0 %v393
  %574 = vmatpush1.msra.mxu0 %v392
  %575 = vmatprep.subr.mxu0 %v390
  %576 = vmatpush1.msra.mxu0 %v389
  %577 = vmatprep.subr.mxu0 %v387
  %578 = vmatpush1.msra.mxu0 %v386
  %579 = vmatprep.subr.mxu0 %v384
  %580 = vmatpush1.msra.mxu0 %v383
  %581 = vmatprep.subr.mxu0 %v381
  %582 = vmatpush1.msra.mxu0 %v380
  %583 = vmatprep.subr.mxu0 %v378
  %584 = vmatpush1.msra.mxu0 %v377
  %585 = vmatprep.subr.mxu0 %v375
  %586 = vmatpush1.msra.mxu0 %v374
  %587 = vmatprep.subr.mxu0 %v372
  %588 = vmatpush1.msra.mxu0 %v371
  %589 = vmatprep.subr.mxu0 %v369
  %590 = vmatpush1.msra.mxu0 %v368
  %591 = vmatprep.subr.mxu0 %v366
  %592 = vmatpush1.msra.mxu0 %v365
  %593 = vmatprep.subr.mxu0 %v363
  %594 = vmatpush1.msra.mxu0 %v362
  %595 = vmatprep.subr.mxu0 %v360
  %596 = vmatpush1.msra.mxu0 %v359
  %597 = vmatprep.subr.mxu0 %v357
  %598 = vmatpush1.msra.mxu0 %v356
  %599 = vmatprep.subr.mxu0 %v354
  %600 = vmatpush1.msra.mxu0 %v353
  %601 = vmatprep.subr.mxu0 %v351
  %602 = vmatpush1.msra.mxu0 %v350
  %603 = vmatprep.subr.mxu0 %v348
  %604 = vmatpush1.msra.mxu0 %v347
  %605 = vmatprep.subr.mxu0 0.0
  %606 = vmatpush2.msra.mxu0 0.0
  %607 = vmatprep.subr.mxu0 0.0
  %608 = vmatpush2.msra.mxu0 0.0
  %609 = vmatprep.subr.mxu0 0.0
  %610 = vmatpush2.msra.mxu0 0.0
  %611 = vmatprep.subr.mxu0 0.0
  %612 = vmatpush2.msra.mxu0 0.0
  %613 = vmatprep.subr.mxu0 0.0
  %614 = vmatpush2.msra.mxu0 0.0
  %615 = vmatprep.subr.mxu0 0.0
  %616 = vmatpush2.msra.mxu0 0.0
  %617 = vmatprep.subr.mxu0 0.0
  %618 = vmatpush2.msra.mxu0 0.0
  %619 = vmatprep.subr.mxu0 0.0
  %620 = vmatpush2.msra.mxu0 0.0
  %621 = vmatprep.subr.mxu0 0.0
  %622 = vmatpush2.msra.mxu0 0.0
  %623 = vmatprep.subr.mxu0 0.0
  %624 = vmatpush2.msra.mxu0 0.0
  %625 = vmatprep.subr.mxu0 0.0
  %626 = vmatpush2.msra.mxu0 0.0
  %627 = vmatprep.subr.mxu0 0.0
  %628 = vmatpush2.msra.mxu0 0.0
  %629 = vmatprep.subr.mxu0 0.0
  %630 = vmatpush2.msra.mxu0 0.0
  %631 = vmatprep.subr.mxu0 0.0
  %632 = vmatpush2.msra.mxu0 0.0
  %633 = vmatprep.subr.mxu0 0.0
  %634 = vmatpush2.msra.mxu0 0.0
  %635 = vmatprep.subr.mxu0 0.0
  %636 = vmatpush2.msra.mxu0 0.0
  %637 = vmatprep.mubr.f32.mxu0 0.0
  %638 = vmatmul.mubr.f32.gmra.mxu0 %v567
  %v639 = vpop.f32.mrf.mxu0
  %v640 = vadd.f32 0.0, %v639
  %v641 = vpop.f32.mrf.mxu0
  %v642 = vadd.f32 0.0, %v641
  %643 = vdwg.mxu0
  %644 = vmatprep.subr.mxu0 0.0
  %645 = vmatpush1.msra.mxu0 %v394
  %646 = vmatprep.subr.mxu0 0.0
  %647 = vmatpush1.msra.mxu0 %v391
  %648 = vmatprep.subr.mxu0 0.0
  %649 = vmatpush1.msra.mxu0 %v388
  %650 = vmatprep.subr.mxu0 0.0
  %651 = vmatpush1.msra.mxu0 %v385
  %652 = vmatprep.subr.mxu0 0.0
  %653 = vmatpush1.msra.mxu0 %v382
  %654 = vmatprep.subr.mxu0 0.0
  %655 = vmatpush1.msra.mxu0 %v379
  %656 = vmatprep.subr.mxu0 0.0
  %657 = vmatpush1.msra.mxu0 %v376
  %658 = vmatprep.subr.mxu0 0.0
  %659 = vmatpush1.msra.mxu0 %v373
  %660 = vmatprep.subr.mxu0 0.0
  %661 = vmatpush1.msra.mxu0 %v370
  %662 = vmatprep.subr.mxu0 0.0
  %663 = vmatpush1.msra.mxu0 %v367
  %664 = vmatprep.subr.mxu0 0.0
  %665 = vmatpush1.msra.mxu0 %v364
  %666 = vmatprep.subr.mxu0 0.0
  %667 = vmatpush1.msra.mxu0 %v361
  %668 = vmatprep.subr.mxu0 0.0
  %669 = vmatpush1.msra.mxu0 %v358
  %670 = vmatprep.subr.mxu0 0.0
  %671 = vmatpush1.msra.mxu0 %v355
  %672 = vmatprep.subr.mxu0 0.0
  %673 = vmatpush1.msra.mxu0 %v352
  %674 = vmatprep.subr.mxu0 0.0
  %675 = vmatpush1.msra.mxu0 %v349
  %676 = vmatprep.subr.mxu0 0.0
  %677 = vmatpush2.msra.mxu0 0.0
  %678 = vmatprep.subr.mxu0 0.0
  %679 = vmatpush2.msra.mxu0 0.0
  %680 = vmatprep.subr.mxu0 0.0
  %681 = vmatpush2.msra.mxu0 0.0
  %682 = vmatprep.subr.mxu0 0.0
  %683 = vmatpush2.msra.mxu0 0.0
  %684 = vmatprep.subr.mxu0 0.0
  %685 = vmatpush2.msra.mxu0 0.0
  %686 = vmatprep.subr.mxu0 0.0
  %687 = vmatpush2.msra.mxu0 0.0
  %688 = vmatprep.subr.mxu0 0.0
  %689 = vmatpush2.msra.mxu0 0.0
  %690 = vmatprep.subr.mxu0 0.0
  %691 = vmatpush2.msra.mxu0 0.0
  %692 = vmatprep.subr.mxu0 0.0
  %693 = vmatpush2.msra.mxu0 0.0
  %694 = vmatprep.subr.mxu0 0.0
  %695 = vmatpush2.msra.mxu0 0.0
  %696 = vmatprep.subr.mxu0 0.0
  %697 = vmatpush2.msra.mxu0 0.0
  %698 = vmatprep.subr.mxu0 0.0
  %699 = vmatpush2.msra.mxu0 0.0
  %700 = vmatprep.subr.mxu0 0.0
  %701 = vmatpush2.msra.mxu0 0.0
  %702 = vmatprep.subr.mxu0 0.0
  %703 = vmatpush2.msra.mxu0 0.0
  %704 = vmatprep.subr.mxu0 0.0
  %705 = vmatpush2.msra.mxu0 0.0
  %706 = vmatprep.subr.mxu0 0.0
  %707 = vmatpush2.msra.mxu0 0.0
  %708 = vmatprep.mubr.f32.mxu0 0.0
  %709 = vmatmul.mubr.f32.gmra.mxu0 %v567
  %v710 = vpop.f32.mrf.mxu0
  %v711 = vadd.f32 0.0, %v710
  %v712 = vpop.f32.mrf.mxu0
  %713 = vdwg.mxu0
  %v714 = vadd.f32 %v570, %v640
  %v715 = vxor.u32 %v714, 2147483648
  %v716 = vmul.f32 %v715, 1.442695
  %v717 = vpow.pop %v716
  %v718 = vadd.f32 %v717, 1.0
  %v719 = vrcp.pop %v718
  %v720 = vmul.f32 1.0, %v719
  %v721 = vadd.f32 %v571, %v642
  %v722 = vxor.u32 %v721, 2147483648
  %v723 = vmul.f32 %v722, 1.442695
  %v724 = vpow.pop %v723
  %v725 = vadd.f32 %v724, 1.0
  %v726 = vrcp.pop %v725
  %v727 = vmul.f32 1.0, %v726
  %v728 = vadd.f32 %v711, %v559
  %v729 = vmul.f32 %v720, %v728
  %v730 = vadd.f32 %v572, %v729
  %v731 = vtanh.pop %v730
  %v732 = vsub.f32 %v567, %v731
  %v733 = vmul.f32 %v727, %v732
  %v734 = vadd.f32 %v731, %v733
  %s735 = scalar_lea.vmem [#allocation4], 8
  %736 = vst [vmem:[%s735] sm:$0xff] %v734
  %s737 = scalar_lea.vmem [#allocation3], 48
  %v738 = vld [vmem:[%s737] sm:$0xff]
  %v739 = vld [vmem:[%s737 + $0x8] sm:$0xff]
  %v740 = vld [vmem:[%s737 + $0x10] sm:$0xff]
  %741 = vmatprep.subr.mxu0 %v393
  %742 = vmatpush1.msra.mxu0 %v392
  %743 = vmatprep.subr.mxu0 %v390
  %744 = vmatpush1.msra.mxu0 %v389
  %745 = vmatprep.subr.mxu0 %v387
  %746 = vmatpush1.msra.mxu0 %v386
  %747 = vmatprep.subr.mxu0 %v384
  %748 = vmatpush1.msra.mxu0 %v383
  %749 = vmatprep.subr.mxu0 %v381
  %750 = vmatpush1.msra.mxu0 %v380
  %751 = vmatprep.subr.mxu0 %v378
  %752 = vmatpush1.msra.mxu0 %v377
  %753 = vmatprep.subr.mxu0 %v375
  %754 = vmatpush1.msra.mxu0 %v374
  %755 = vmatprep.subr.mxu0 %v372
  %756 = vmatpush1.msra.mxu0 %v371
  %757 = vmatprep.subr.mxu0 %v369
  %758 = vmatpush1.msra.mxu0 %v368
  %759 = vmatprep.subr.mxu0 %v366
  %760 = vmatpush1.msra.mxu0 %v365
  %761 = vmatprep.subr.mxu0 %v363
  %762 = vmatpush1.msra.mxu0 %v362
  %763 = vmatprep.subr.mxu0 %v360
  %764 = vmatpush1.msra.mxu0 %v359
  %765 = vmatprep.subr.mxu0 %v357
  %766 = vmatpush1.msra.mxu0 %v356
  %767 = vmatprep.subr.mxu0 %v354
  %768 = vmatpush1.msra.mxu0 %v353
  %769 = vmatprep.subr.mxu0 %v351
  %770 = vmatpush1.msra.mxu0 %v350
  %771 = vmatprep.subr.mxu0 %v348
  %772 = vmatpush1.msra.mxu0 %v347
  %773 = vmatprep.subr.mxu0 0.0
  %774 = vmatpush2.msra.mxu0 0.0
  %775 = vmatprep.subr.mxu0 0.0
  %776 = vmatpush2.msra.mxu0 0.0
  %777 = vmatprep.subr.mxu0 0.0
  %778 = vmatpush2.msra.mxu0 0.0
  %779 = vmatprep.subr.mxu0 0.0
  %780 = vmatpush2.msra.mxu0 0.0
  %781 = vmatprep.subr.mxu0 0.0
  %782 = vmatpush2.msra.mxu0 0.0
  %783 = vmatprep.subr.mxu0 0.0
  %784 = vmatpush2.msra.mxu0 0.0
  %785 = vmatprep.subr.mxu0 0.0
  %786 = vmatpush2.msra.mxu0 0.0
  %787 = vmatprep.subr.mxu0 0.0
  %788 = vmatpush2.msra.mxu0 0.0
  %789 = vmatprep.subr.mxu0 0.0
  %790 = vmatpush2.msra.mxu0 0.0
  %791 = vmatprep.subr.mxu0 0.0
  %792 = vmatpush2.msra.mxu0 0.0
  %793 = vmatprep.subr.mxu0 0.0
  %794 = vmatpush2.msra.mxu0 0.0
  %795 = vmatprep.subr.mxu0 0.0
  %796 = vmatpush2.msra.mxu0 0.0
  %797 = vmatprep.subr.mxu0 0.0
  %798 = vmatpush2.msra.mxu0 0.0
  %799 = vmatprep.subr.mxu0 0.0
  %800 = vmatpush2.msra.mxu0 0.0
  %801 = vmatprep.subr.mxu0 0.0
  %802 = vmatpush2.msra.mxu0 0.0
  %803 = vmatprep.subr.mxu0 0.0
  %804 = vmatpush2.msra.mxu0 0.0
  %805 = vmatprep.mubr.f32.mxu0 0.0
  %806 = vmatmul.mubr.f32.gmra.mxu0 %v734
  %v807 = vpop.f32.mrf.mxu0
  %v808 = vadd.f32 0.0, %v807
  %v809 = vpop.f32.mrf.mxu0
  %v810 = vadd.f32 0.0, %v809
  %811 = vdwg.mxu0
  %812 = vmatprep.subr.mxu0 0.0
  %813 = vmatpush1.msra.mxu0 %v394
  %814 = vmatprep.subr.mxu0 0.0
  %815 = vmatpush1.msra.mxu0 %v391
  %816 = vmatprep.subr.mxu0 0.0
  %817 = vmatpush1.msra.mxu0 %v388
  %818 = vmatprep.subr.mxu0 0.0
  %819 = vmatpush1.msra.mxu0 %v385
  %820 = vmatprep.subr.mxu0 0.0
  %821 = vmatpush1.msra.mxu0 %v382
  %822 = vmatprep.subr.mxu0 0.0
  %823 = vmatpush1.msra.mxu0 %v379
  %824 = vmatprep.subr.mxu0 0.0
  %825 = vmatpush1.msra.mxu0 %v376
  %826 = vmatprep.subr.mxu0 0.0
  %827 = vmatpush1.msra.mxu0 %v373
  %828 = vmatprep.subr.mxu0 0.0
  %829 = vmatpush1.msra.mxu0 %v370
  %830 = vmatprep.subr.mxu0 0.0
  %831 = vmatpush1.msra.mxu0 %v367
  %832 = vmatprep.subr.mxu0 0.0
  %833 = vmatpush1.msra.mxu0 %v364
  %834 = vmatprep.subr.mxu0 0.0
  %835 = vmatpush1.msra.mxu0 %v361
  %836 = vmatprep.subr.mxu0 0.0
  %837 = vmatpush1.msra.mxu0 %v358
  %838 = vmatprep.subr.mxu0 0.0
  %839 = vmatpush1.msra.mxu0 %v355
  %840 = vmatprep.subr.mxu0 0.0
  %841 = vmatpush1.msra.mxu0 %v352
  %842 = vmatprep.subr.mxu0 0.0
  %843 = vmatpush1.msra.mxu0 %v349
  %844 = vmatprep.subr.mxu0 0.0
  %845 = vmatpush2.msra.mxu0 0.0
  %846 = vmatprep.subr.mxu0 0.0
  %847 = vmatpush2.msra.mxu0 0.0
  %848 = vmatprep.subr.mxu0 0.0
  %849 = vmatpush2.msra.mxu0 0.0
  %850 = vmatprep.subr.mxu0 0.0
  %851 = vmatpush2.msra.mxu0 0.0
  %852 = vmatprep.subr.mxu0 0.0
  %853 = vmatpush2.msra.mxu0 0.0
  %854 = vmatprep.subr.mxu0 0.0
  %855 = vmatpush2.msra.mxu0 0.0
  %856 = vmatprep.subr.mxu0 0.0
  %857 = vmatpush2.msra.mxu0 0.0
  %858 = vmatprep.subr.mxu0 0.0
  %859 = vmatpush2.msra.mxu0 0.0
  %860 = vmatprep.subr.mxu0 0.0
  %861 = vmatpush2.msra.mxu0 0.0
  %862 = vmatprep.subr.mxu0 0.0
  %863 = vmatpush2.msra.mxu0 0.0
  %864 = vmatprep.subr.mxu0 0.0
  %865 = vmatpush2.msra.mxu0 0.0
  %866 = vmatprep.subr.mxu0 0.0
  %867 = vmatpush2.msra.mxu0 0.0
  %868 = vmatprep.subr.mxu0 0.0
  %869 = vmatpush2.msra.mxu0 0.0
  %870 = vmatprep.subr.mxu0 0.0
  %871 = vmatpush2.msra.mxu0 0.0
  %872 = vmatprep.subr.mxu0 0.0
  %873 = vmatpush2.msra.mxu0 0.0
  %874 = vmatprep.subr.mxu0 0.0
  %875 = vmatpush2.msra.mxu0 0.0
  %876 = vmatprep.mubr.f32.mxu0 0.0
  %877 = vmatmul.mubr.f32.gmra.mxu0 %v734
  %v878 = vpop.f32.mrf.mxu0
  %v879 = vadd.f32 0.0, %v878
  %v880 = vpop.f32.mrf.mxu0
  %881 = vdwg.mxu0
  %v882 = vadd.f32 %v738, %v808
  %v883 = vxor.u32 %v882, 2147483648
  %v884 = vmul.f32 %v883, 1.442695
  %v885 = vpow.pop %v884
  %v886 = vadd.f32 %v885, 1.0
  %v887 = vrcp.pop %v886
  %v888 = vmul.f32 1.0, %v887
  %v889 = vadd.f32 %v739, %v810
  %v890 = vxor.u32 %v889, 2147483648
  %v891 = vmul.f32 %v890, 1.442695
  %v892 = vpow.pop %v891
  %v893 = vadd.f32 %v892, 1.0
  %v894 = vrcp.pop %v893
  %v895 = vmul.f32 1.0, %v894
  %v896 = vadd.f32 %v879, %v559
  %v897 = vmul.f32 %v888, %v896
  %v898 = vadd.f32 %v740, %v897
  %v899 = vtanh.pop %v898
  %v900 = vsub.f32 %v734, %v899
  %v901 = vmul.f32 %v895, %v900
  %v902 = vadd.f32 %v899, %v901
  %s903 = scalar_lea.vmem [#allocation4], 16
  %904 = vst [vmem:[%s903] sm:$0xff] %v902
  %s905 = scalar_lea.vmem [#allocation3], 72
  %v906 = vld [vmem:[%s905] sm:$0xff]
  %v907 = vld [vmem:[%s905 + $0x8] sm:$0xff]
  %v908 = vld [vmem:[%s905 + $0x10] sm:$0xff]
  %909 = vmatprep.subr.mxu0 %v393
  %910 = vmatpush1.msra.mxu0 %v392
  %911 = vmatprep.subr.mxu0 %v390
  %912 = vmatpush1.msra.mxu0 %v389
  %913 = vmatprep.subr.mxu0 %v387
  %914 = vmatpush1.msra.mxu0 %v386
  %915 = vmatprep.subr.mxu0 %v384
  %916 = vmatpush1.msra.mxu0 %v383
  %917 = vmatprep.subr.mxu0 %v381
  %918 = vmatpush1.msra.mxu0 %v380
  %919 = vmatprep.subr.mxu0 %v378
  %920 = vmatpush1.msra.mxu0 %v377
  %921 = vmatprep.subr.mxu0 %v375
  %922 = vmatpush1.msra.mxu0 %v374
  %923 = vmatprep.subr.mxu0 %v372
  %924 = vmatpush1.msra.mxu0 %v371
  %925 = vmatprep.subr.mxu0 %v369
  %926 = vmatpush1.msra.mxu0 %v368
  %927 = vmatprep.subr.mxu0 %v366
  %928 = vmatpush1.msra.mxu0 %v365
  %929 = vmatprep.subr.mxu0 %v363
  %930 = vmatpush1.msra.mxu0 %v362
  %931 = vmatprep.subr.mxu0 %v360
  %932 = vmatpush1.msra.mxu0 %v359
  %933 = vmatprep.subr.mxu0 %v357
  %934 = vmatpush1.msra.mxu0 %v356
  %935 = vmatprep.subr.mxu0 %v354
  %936 = vmatpush1.msra.mxu0 %v353
  %937 = vmatprep.subr.mxu0 %v351
  %938 = vmatpush1.msra.mxu0 %v350
  %939 = vmatprep.subr.mxu0 %v348
  %940 = vmatpush1.msra.mxu0 %v347
  %941 = vmatprep.subr.mxu0 0.0
  %942 = vmatpush2.msra.mxu0 0.0
  %943 = vmatprep.subr.mxu0 0.0
  %944 = vmatpush2.msra.mxu0 0.0
  %945 = vmatprep.subr.mxu0 0.0
  %946 = vmatpush2.msra.mxu0 0.0
  %947 = vmatprep.subr.mxu0 0.0
  %948 = vmatpush2.msra.mxu0 0.0
  %949 = vmatprep.subr.mxu0 0.0
  %950 = vmatpush2.msra.mxu0 0.0
  %951 = vmatprep.subr.mxu0 0.0
  %952 = vmatpush2.msra.mxu0 0.0
  %953 = vmatprep.subr.mxu0 0.0
  %954 = vmatpush2.msra.mxu0 0.0
  %955 = vmatprep.subr.mxu0 0.0
  %956 = vmatpush2.msra.mxu0 0.0
  %957 = vmatprep.subr.mxu0 0.0
  %958 = vmatpush2.msra.mxu0 0.0
  %959 = vmatprep.subr.mxu0 0.0
  %960 = vmatpush2.msra.mxu0 0.0
  %961 = vmatprep.subr.mxu0 0.0
  %962 = vmatpush2.msra.mxu0 0.0
  %963 = vmatprep.subr.mxu0 0.0
  %964 = vmatpush2.msra.mxu0 0.0
  %965 = vmatprep.subr.mxu0 0.0
  %966 = vmatpush2.msra.mxu0 0.0
  %967 = vmatprep.subr.mxu0 0.0
  %968 = vmatpush2.msra.mxu0 0.0
  %969 = vmatprep.subr.mxu0 0.0
  %970 = vmatpush2.msra.mxu0 0.0
  %971 = vmatprep.subr.mxu0 0.0
  %972 = vmatpush2.msra.mxu0 0.0
  %973 = vmatprep.mubr.f32.mxu0 0.0
  %974 = vmatmul.mubr.f32.gmra.mxu0 %v902
  %v975 = vpop.f32.mrf.mxu0
  %v976 = vadd.f32 0.0, %v975
  %v977 = vpop.f32.mrf.mxu0
  %v978 = vadd.f32 0.0, %v977
  %979 = vdwg.mxu0
  %980 = vmatprep.subr.mxu0 0.0
  %981 = vmatpush1.msra.mxu0 %v394
  %982 = vmatprep.subr.mxu0 0.0
  %983 = vmatpush1.msra.mxu0 %v391
  %984 = vmatprep.subr.mxu0 0.0
  %985 = vmatpush1.msra.mxu0 %v388
  %986 = vmatprep.subr.mxu0 0.0
  %987 = vmatpush1.msra.mxu0 %v385
  %988 = vmatprep.subr.mxu0 0.0
  %989 = vmatpush1.msra.mxu0 %v382
  %990 = vmatprep.subr.mxu0 0.0
  %991 = vmatpush1.msra.mxu0 %v379
  %992 = vmatprep.subr.mxu0 0.0
  %993 = vmatpush1.msra.mxu0 %v376
  %994 = vmatprep.subr.mxu0 0.0
  %995 = vmatpush1.msra.mxu0 %v373
  %996 = vmatprep.subr.mxu0 0.0
  %997 = vmatpush1.msra.mxu0 %v370
  %998 = vmatprep.subr.mxu0 0.0
  %999 = vmatpush1.msra.mxu0 %v367
  %1000 = vmatprep.subr.mxu0 0.0
  %1001 = vmatpush1.msra.mxu0 %v364
  %1002 = vmatprep.subr.mxu0 0.0
  %1003 = vmatpush1.msra.mxu0 %v361
  %1004 = vmatprep.subr.mxu0 0.0
  %1005 = vmatpush1.msra.mxu0 %v358
  %1006 = vmatprep.subr.mxu0 0.0
  %1007 = vmatpush1.msra.mxu0 %v355
  %1008 = vmatprep.subr.mxu0 0.0
  %1009 = vmatpush1.msra.mxu0 %v352
  %1010 = vmatprep.subr.mxu0 0.0
  %1011 = vmatpush1.msra.mxu0 %v349
  %1012 = vmatprep.subr.mxu0 0.0
  %1013 = vmatpush2.msra.mxu0 0.0
  %1014 = vmatprep.subr.mxu0 0.0
  %1015 = vmatpush2.msra.mxu0 0.0
  %1016 = vmatprep.subr.mxu0 0.0
  %1017 = vmatpush2.msra.mxu0 0.0
  %1018 = vmatprep.subr.mxu0 0.0
  %1019 = vmatpush2.msra.mxu0 0.0
  %1020 = vmatprep.subr.mxu0 0.0
  %1021 = vmatpush2.msra.mxu0 0.0
  %1022 = vmatprep.subr.mxu0 0.0
  %1023 = vmatpush2.msra.mxu0 0.0
  %1024 = vmatprep.subr.mxu0 0.0
  %1025 = vmatpush2.msra.mxu0 0.0
  %1026 = vmatprep.subr.mxu0 0.0
  %1027 = vmatpush2.msra.mxu0 0.0
  %1028 = vmatprep.subr.mxu0 0.0
  %1029 = vmatpush2.msra.mxu0 0.0
  %1030 = vmatprep.subr.mxu0 0.0
  %1031 = vmatpush2.msra.mxu0 0.0
  %1032 = vmatprep.subr.mxu0 0.0
  %1033 = vmatpush2.msra.mxu0 0.0
  %1034 = vmatprep.subr.mxu0 0.0
  %1035 = vmatpush2.msra.mxu0 0.0
  %1036 = vmatprep.subr.mxu0 0.0
  %1037 = vmatpush2.msra.mxu0 0.0
  %1038 = vmatprep.subr.mxu0 0.0
  %1039 = vmatpush2.msra.mxu0 0.0
  %1040 = vmatprep.subr.mxu0 0.0
  %1041 = vmatpush2.msra.mxu0 0.0
  %1042 = vmatprep.subr.mxu0 0.0
  %1043 = vmatpush2.msra.mxu0 0.0
  %1044 = vmatprep.mubr.f32.mxu0 0.0
  %1045 = vmatmul.mubr.f32.gmra.mxu0 %v902
  %v1046 = vpop.f32.mrf.mxu0
  %v1047 = vadd.f32 0.0, %v1046
  %v1048 = vpop.f32.mrf.mxu0
  %1049 = vdwg.mxu0
  %v1050 = vadd.f32 %v906, %v976
  %v1051 = vxor.u32 %v1050, 2147483648
  %v1052 = vmul.f32 %v1051, 1.442695
  %v1053 = vpow.pop %v1052
  %v1054 = vadd.f32 %v1053, 1.0
  %v1055 = vrcp.pop %v1054
  %v1056 = vmul.f32 1.0, %v1055
  %v1057 = vadd.f32 %v907, %v978
  %v1058 = vxor.u32 %v1057, 2147483648
  %v1059 = vmul.f32 %v1058, 1.442695
  %v1060 = vpow.pop %v1059
  %v1061 = vadd.f32 %v1060, 1.0
  %v1062 = vrcp.pop %v1061
  %v1063 = vmul.f32 1.0, %v1062
  %v1064 = vadd.f32 %v1047, %v559
  %v1065 = vmul.f32 %v1056, %v1064
  %v1066 = vadd.f32 %v908, %v1065
  %v1067 = vtanh.pop %v1066
  %v1068 = vsub.f32 %v902, %v1067
  %v1069 = vmul.f32 %v1063, %v1068
  %v1070 = vadd.f32 %v1067, %v1069
  %s1071 = scalar_lea.vmem [#allocation4], 24
  %1072 = vst [vmem:[%s1071] sm:$0xff] %v1070
  %s1073 = scalar_lea.vmem [#allocation3], 96
  %v1074 = vld [vmem:[%s1073] sm:$0xff]
  %v1075 = vld [vmem:[%s1073 + $0x8] sm:$0xff]
  %v1076 = vld [vmem:[%s1073 + $0x10] sm:$0xff]
  %1077 = vmatprep.subr.mxu0 %v393
  %1078 = vmatpush1.msra.mxu0 %v392
  %1079 = vmatprep.subr.mxu0 %v390
  %1080 = vmatpush1.msra.mxu0 %v389
  %1081 = vmatprep.subr.mxu0 %v387
  %1082 = vmatpush1.msra.mxu0 %v386
  %1083 = vmatprep.subr.mxu0 %v384
  %1084 = vmatpush1.msra.mxu0 %v383
  %1085 = vmatprep.subr.mxu0 %v381
  %1086 = vmatpush1.msra.mxu0 %v380
  %1087 = vmatprep.subr.mxu0 %v378
  %1088 = vmatpush1.msra.mxu0 %v377
  %1089 = vmatprep.subr.mxu0 %v375
  %1090 = vmatpush1.msra.mxu0 %v374
  %1091 = vmatprep.subr.mxu0 %v372
  %1092 = vmatpush1.msra.mxu0 %v371
  %1093 = vmatprep.subr.mxu0 %v369
  %1094 = vmatpush1.msra.mxu0 %v368
  %1095 = vmatprep.subr.mxu0 %v366
  %1096 = vmatpush1.msra.mxu0 %v365
  %1097 = vmatprep.subr.mxu0 %v363
  %1098 = vmatpush1.msra.mxu0 %v362
  %1099 = vmatprep.subr.mxu0 %v360
  %1100 = vmatpush1.msra.mxu0 %v359
  %1101 = vmatprep.subr.mxu0 %v357
  %1102 = vmatpush1.msra.mxu0 %v356
  %1103 = vmatprep.subr.mxu0 %v354
  %1104 = vmatpush1.msra.mxu0 %v353
  %1105 = vmatprep.subr.mxu0 %v351
  %1106 = vmatpush1.msra.mxu0 %v350
  %1107 = vmatprep.subr.mxu0 %v348
  %1108 = vmatpush1.msra.mxu0 %v347
  %1109 = vmatprep.subr.mxu0 0.0
  %1110 = vmatpush2.msra.mxu0 0.0
  %1111 = vmatprep.subr.mxu0 0.0
  %1112 = vmatpush2.msra.mxu0 0.0
  %1113 = vmatprep.subr.mxu0 0.0
  %1114 = vmatpush2.msra.mxu0 0.0
  %1115 = vmatprep.subr.mxu0 0.0
  %1116 = vmatpush2.msra.mxu0 0.0
  %1117 = vmatprep.subr.mxu0 0.0
  %1118 = vmatpush2.msra.mxu0 0.0
  %1119 = vmatprep.subr.mxu0 0.0
  %1120 = vmatpush2.msra.mxu0 0.0
  %1121 = vmatprep.subr.mxu0 0.0
  %1122 = vmatpush2.msra.mxu0 0.0
  %1123 = vmatprep.subr.mxu0 0.0
  %1124 = vmatpush2.msra.mxu0 0.0
  %1125 = vmatprep.subr.mxu0 0.0
  %1126 = vmatpush2.msra.mxu0 0.0
  %1127 = vmatprep.subr.mxu0 0.0
  %1128 = vmatpush2.msra.mxu0 0.0
  %1129 = vmatprep.subr.mxu0 0.0
  %1130 = vmatpush2.msra.mxu0 0.0
  %1131 = vmatprep.subr.mxu0 0.0
  %1132 = vmatpush2.msra.mxu0 0.0
  %1133 = vmatprep.subr.mxu0 0.0
  %1134 = vmatpush2.msra.mxu0 0.0
  %1135 = vmatprep.subr.mxu0 0.0
  %1136 = vmatpush2.msra.mxu0 0.0
  %1137 = vmatprep.subr.mxu0 0.0
  %1138 = vmatpush2.msra.mxu0 0.0
  %1139 = vmatprep.subr.mxu0 0.0
  %1140 = vmatpush2.msra.mxu0 0.0
  %1141 = vmatprep.mubr.f32.mxu0 0.0
  %1142 = vmatmul.mubr.f32.gmra.mxu0 %v1070
  %v1143 = vpop.f32.mrf.mxu0
  %v1144 = vadd.f32 0.0, %v1143
  %v1145 = vpop.f32.mrf.mxu0
  %v1146 = vadd.f32 0.0, %v1145
  %1147 = vdwg.mxu0
  %1148 = vmatprep.subr.mxu0 0.0
  %1149 = vmatpush1.msra.mxu0 %v394
  %1150 = vmatprep.subr.mxu0 0.0
  %1151 = vmatpush1.msra.mxu0 %v391
  %1152 = vmatprep.subr.mxu0 0.0
  %1153 = vmatpush1.msra.mxu0 %v388
  %1154 = vmatprep.subr.mxu0 0.0
  %1155 = vmatpush1.msra.mxu0 %v385
  %1156 = vmatprep.subr.mxu0 0.0
  %1157 = vmatpush1.msra.mxu0 %v382
  %1158 = vmatprep.subr.mxu0 0.0
  %1159 = vmatpush1.msra.mxu0 %v379
  %1160 = vmatprep.subr.mxu0 0.0
  %1161 = vmatpush1.msra.mxu0 %v376
  %1162 = vmatprep.subr.mxu0 0.0
  %1163 = vmatpush1.msra.mxu0 %v373
  %1164 = vmatprep.subr.mxu0 0.0
  %1165 = vmatpush1.msra.mxu0 %v370
  %1166 = vmatprep.subr.mxu0 0.0
  %1167 = vmatpush1.msra.mxu0 %v367
  %1168 = vmatprep.subr.mxu0 0.0
  %1169 = vmatpush1.msra.mxu0 %v364
  %1170 = vmatprep.subr.mxu0 0.0
  %1171 = vmatpush1.msra.mxu0 %v361
  %1172 = vmatprep.subr.mxu0 0.0
  %1173 = vmatpush1.msra.mxu0 %v358
  %1174 = vmatprep.subr.mxu0 0.0
  %1175 = vmatpush1.msra.mxu0 %v355
  %1176 = vmatprep.subr.mxu0 0.0
  %1177 = vmatpush1.msra.mxu0 %v352
  %1178 = vmatprep.subr.mxu0 0.0
  %1179 = vmatpush1.msra.mxu0 %v349
  %1180 = vmatprep.subr.mxu0 0.0
  %1181 = vmatpush2.msra.mxu0 0.0
  %1182 = vmatprep.subr.mxu0 0.0
  %1183 = vmatpush2.msra.mxu0 0.0
  %1184 = vmatprep.subr.mxu0 0.0
  %1185 = vmatpush2.msra.mxu0 0.0
  %1186 = vmatprep.subr.mxu0 0.0
  %1187 = vmatpush2.msra.mxu0 0.0
  %1188 = vmatprep.subr.mxu0 0.0
  %1189 = vmatpush2.msra.mxu0 0.0
  %1190 = vmatprep.subr.mxu0 0.0
  %1191 = vmatpush2.msra.mxu0 0.0
  %1192 = vmatprep.subr.mxu0 0.0
  %1193 = vmatpush2.msra.mxu0 0.0
  %1194 = vmatprep.subr.mxu0 0.0
  %1195 = vmatpush2.msra.mxu0 0.0
  %1196 = vmatprep.subr.mxu0 0.0
  %1197 = vmatpush2.msra.mxu0 0.0
  %1198 = vmatprep.subr.mxu0 0.0
  %1199 = vmatpush2.msra.mxu0 0.0
  %1200 = vmatprep.subr.mxu0 0.0
  %1201 = vmatpush2.msra.mxu0 0.0
  %1202 = vmatprep.subr.mxu0 0.0
  %1203 = vmatpush2.msra.mxu0 0.0
  %1204 = vmatprep.subr.mxu0 0.0
  %1205 = vmatpush2.msra.mxu0 0.0
  %1206 = vmatprep.subr.mxu0 0.0
  %1207 = vmatpush2.msra.mxu0 0.0
  %1208 = vmatprep.subr.mxu0 0.0
  %1209 = vmatpush2.msra.mxu0 0.0
  %1210 = vmatprep.subr.mxu0 0.0
  %1211 = vmatpush2.msra.mxu0 0.0
  %1212 = vmatprep.mubr.f32.mxu0 0.0
  %1213 = vmatmul.mubr.f32.gmra.mxu0 %v1070
  %v1214 = vpop.f32.mrf.mxu0
  %v1215 = vadd.f32 0.0, %v1214
  %v1216 = vpop.f32.mrf.mxu0
  %1217 = vdwg.mxu0
  %v1218 = vadd.f32 %v1074, %v1144
  %v1219 = vxor.u32 %v1218, 2147483648
  %v1220 = vmul.f32 %v1219, 1.442695
  %v1221 = vpow.pop %v1220
  %v1222 = vadd.f32 %v1221, 1.0
  %v1223 = vrcp.pop %v1222
  %v1224 = vmul.f32 1.0, %v1223
  %v1225 = vadd.f32 %v1075, %v1146
  %v1226 = vxor.u32 %v1225, 2147483648
  %v1227 = vmul.f32 %v1226, 1.442695
  %v1228 = vpow.pop %v1227
  %v1229 = vadd.f32 %v1228, 1.0
  %v1230 = vrcp.pop %v1229
  %v1231 = vmul.f32 1.0, %v1230
  %v1232 = vadd.f32 %v1215, %v559
  %v1233 = vmul.f32 %v1224, %v1232
  %v1234 = vadd.f32 %v1076, %v1233
  %v1235 = vtanh.pop %v1234
  %v1236 = vsub.f32 %v1070, %v1235
  %v1237 = vmul.f32 %v1231, %v1236
  %v1238 = vadd.f32 %v1235, %v1237
  %s1239 = scalar_lea.vmem [#allocation4], 32
  %1240 = vst [vmem:[%s1239] sm:$0xff] %v1238
  %s1241 = scalar_lea.vmem [#allocation3], 120
  %v1242 = vld [vmem:[%s1241] sm:$0xff]
  %v1243 = vld [vmem:[%s1241 + $0x8] sm:$0xff]
  %v1244 = vld [vmem:[%s1241 + $0x10] sm:$0xff]
  %1245 = vmatprep.subr.mxu0 %v393
  %1246 = vmatpush1.msra.mxu0 %v392
  %1247 = vmatprep.subr.mxu0 %v390
  %1248 = vmatpush1.msra.mxu0 %v389
  %1249 = vmatprep.subr.mxu0 %v387
  %1250 = vmatpush1.msra.mxu0 %v386
  %1251 = vmatprep.subr.mxu0 %v384
  %1252 = vmatpush1.msra.mxu0 %v383
  %1253 = vmatprep.subr.mxu0 %v381
  %1254 = vmatpush1.msra.mxu0 %v380
  %1255 = vmatprep.subr.mxu0 %v378
  %1256 = vmatpush1.msra.mxu0 %v377
  %1257 = vmatprep.subr.mxu0 %v375
  %1258 = vmatpush1.msra.mxu0 %v374
  %1259 = vmatprep.subr.mxu0 %v372
  %1260 = vmatpush1.msra.mxu0 %v371
  %1261 = vmatprep.subr.mxu0 %v369
  %1262 = vmatpush1.msra.mxu0 %v368
  %1263 = vmatprep.subr.mxu0 %v366
  %1264 = vmatpush1.msra.mxu0 %v365
  %1265 = vmatprep.subr.mxu0 %v363
  %1266 = vmatpush1.msra.mxu0 %v362
  %1267 = vmatprep.subr.mxu0 %v360
  %1268 = vmatpush1.msra.mxu0 %v359
  %1269 = vmatprep.subr.mxu0 %v357
  %1270 = vmatpush1.msra.mxu0 %v356
  %1271 = vmatprep.subr.mxu0 %v354
  %1272 = vmatpush1.msra.mxu0 %v353
  %1273 = vmatprep.subr.mxu0 %v351
  %1274 = vmatpush1.msra.mxu0 %v350
  %1275 = vmatprep.subr.mxu0 %v348
  %1276 = vmatpush1.msra.mxu0 %v347
  %1277 = vmatprep.subr.mxu0 0.0
  %1278 = vmatpush2.msra.mxu0 0.0
  %1279 = vmatprep.subr.mxu0 0.0
  %1280 = vmatpush2.msra.mxu0 0.0
  %1281 = vmatprep.subr.mxu0 0.0
  %1282 = vmatpush2.msra.mxu0 0.0
  %1283 = vmatprep.subr.mxu0 0.0
  %1284 = vmatpush2.msra.mxu0 0.0
  %1285 = vmatprep.subr.mxu0 0.0
  %1286 = vmatpush2.msra.mxu0 0.0
  %1287 = vmatprep.subr.mxu0 0.0
  %1288 = vmatpush2.msra.mxu0 0.0
  %1289 = vmatprep.subr.mxu0 0.0
  %1290 = vmatpush2.msra.mxu0 0.0
  %1291 = vmatprep.subr.mxu0 0.0
  %1292 = vmatpush2.msra.mxu0 0.0
  %1293 = vmatprep.subr.mxu0 0.0
  %1294 = vmatpush2.msra.mxu0 0.0
  %1295 = vmatprep.subr.mxu0 0.0
  %1296 = vmatpush2.msra.mxu0 0.0
  %1297 = vmatprep.subr.mxu0 0.0
  %1298 = vmatpush2.msra.mxu0 0.0
  %1299 = vmatprep.subr.mxu0 0.0
  %1300 = vmatpush2.msra.mxu0 0.0
  %1301 = vmatprep.subr.mxu0 0.0
  %1302 = vmatpush2.msra.mxu0 0.0
  %1303 = vmatprep.subr.mxu0 0.0
  %1304 = vmatpush2.msra.mxu0 0.0
  %1305 = vmatprep.subr.mxu0 0.0
  %1306 = vmatpush2.msra.mxu0 0.0
  %1307 = vmatprep.subr.mxu0 0.0
  %1308 = vmatpush2.msra.mxu0 0.0
  %1309 = vmatprep.mubr.f32.mxu0 0.0
  %1310 = vmatmul.mubr.f32.gmra.mxu0 %v1238
  %v1311 = vpop.f32.mrf.mxu0
  %v1312 = vadd.f32 0.0, %v1311
  %v1313 = vpop.f32.mrf.mxu0
  %v1314 = vadd.f32 0.0, %v1313
  %1315 = vdwg.mxu0
  %1316 = vmatprep.subr.mxu0 0.0
  %1317 = vmatpush1.msra.mxu0 %v394
  %1318 = vmatprep.subr.mxu0 0.0
  %1319 = vmatpush1.msra.mxu0 %v391
  %1320 = vmatprep.subr.mxu0 0.0
  %1321 = vmatpush1.msra.mxu0 %v388
  %1322 = vmatprep.subr.mxu0 0.0
  %1323 = vmatpush1.msra.mxu0 %v385
  %1324 = vmatprep.subr.mxu0 0.0
  %1325 = vmatpush1.msra.mxu0 %v382
  %1326 = vmatprep.subr.mxu0 0.0
  %1327 = vmatpush1.msra.mxu0 %v379
  %1328 = vmatprep.subr.mxu0 0.0
  %1329 = vmatpush1.msra.mxu0 %v376
  %1330 = vmatprep.subr.mxu0 0.0
  %1331 = vmatpush1.msra.mxu0 %v373
  %1332 = vmatprep.subr.mxu0 0.0
  %1333 = vmatpush1.msra.mxu0 %v370
  %1334 = vmatprep.subr.mxu0 0.0
  %1335 = vmatpush1.msra.mxu0 %v367
  %1336 = vmatprep.subr.mxu0 0.0
  %1337 = vmatpush1.msra.mxu0 %v364
  %1338 = vmatprep.subr.mxu0 0.0
  %1339 = vmatpush1.msra.mxu0 %v361
  %1340 = vmatprep.subr.mxu0 0.0
  %1341 = vmatpush1.msra.mxu0 %v358
  %1342 = vmatprep.subr.mxu0 0.0
  %1343 = vmatpush1.msra.mxu0 %v355
  %1344 = vmatprep.subr.mxu0 0.0
  %1345 = vmatpush1.msra.mxu0 %v352
  %1346 = vmatprep.subr.mxu0 0.0
  %1347 = vmatpush1.msra.mxu0 %v349
  %1348 = vmatprep.subr.mxu0 0.0
  %1349 = vmatpush2.msra.mxu0 0.0
  %1350 = vmatprep.subr.mxu0 0.0
  %1351 = vmatpush2.msra.mxu0 0.0
  %1352 = vmatprep.subr.mxu0 0.0
  %1353 = vmatpush2.msra.mxu0 0.0
  %1354 = vmatprep.subr.mxu0 0.0
  %1355 = vmatpush2.msra.mxu0 0.0
  %1356 = vmatprep.subr.mxu0 0.0
  %1357 = vmatpush2.msra.mxu0 0.0
  %1358 = vmatprep.subr.mxu0 0.0
  %1359 = vmatpush2.msra.mxu0 0.0
  %1360 = vmatprep.subr.mxu0 0.0
  %1361 = vmatpush2.msra.mxu0 0.0
  %1362 = vmatprep.subr.mxu0 0.0
  %1363 = vmatpush2.msra.mxu0 0.0
  %1364 = vmatprep.subr.mxu0 0.0
  %1365 = vmatpush2.msra.mxu0 0.0
  %1366 = vmatprep.subr.mxu0 0.0
  %1367 = vmatpush2.msra.mxu0 0.0
  %1368 = vmatprep.subr.mxu0 0.0
  %1369 = vmatpush2.msra.mxu0 0.0
  %1370 = vmatprep.subr.mxu0 0.0
  %1371 = vmatpush2.msra.mxu0 0.0
  %1372 = vmatprep.subr.mxu0 0.0
  %1373 = vmatpush2.msra.mxu0 0.0
  %1374 = vmatprep.subr.mxu0 0.0
  %1375 = vmatpush2.msra.mxu0 0.0
  %1376 = vmatprep.subr.mxu0 0.0
  %1377 = vmatpush2.msra.mxu0 0.0
  %1378 = vmatprep.subr.mxu0 0.0
  %1379 = vmatpush2.msra.mxu0 0.0
  %1380 = vmatprep.mubr.f32.mxu0 0.0
  %1381 = vmatmul.mubr.f32.gmra.mxu0 %v1238
  %v1382 = vpop.f32.mrf.mxu0
  %v1383 = vadd.f32 0.0, %v1382
  %v1384 = vpop.f32.mrf.mxu0
  %1385 = vdwg.mxu0
  %v1386 = vadd.f32 %v1242, %v1312
  %v1387 = vxor.u32 %v1386, 2147483648
  %v1388 = vmul.f32 %v1387, 1.442695
  %v1389 = vpow.pop %v1388
  %v1390 = vadd.f32 %v1389, 1.0
  %v1391 = vrcp.pop %v1390
  %v1392 = vmul.f32 1.0, %v1391
  %v1393 = vadd.f32 %v1243, %v1314
  %v1394 = vxor.u32 %v1393, 2147483648
  %v1395 = vmul.f32 %v1394, 1.442695
  %v1396 = vpow.pop %v1395
  %v1397 = vadd.f32 %v1396, 1.0
  %v1398 = vrcp.pop %v1397
  %v1399 = vmul.f32 1.0, %v1398
  %v1400 = vadd.f32 %v1383, %v559
  %v1401 = vmul.f32 %v1392, %v1400
  %v1402 = vadd.f32 %v1244, %v1401
  %v1403 = vtanh.pop %v1402
  %v1404 = vsub.f32 %v1238, %v1403
  %v1405 = vmul.f32 %v1399, %v1404
  %v1406 = vadd.f32 %v1403, %v1405
  %s1407 = scalar_lea.vmem [#allocation4], 40
  %1408 = vst [vmem:[%s1407] sm:$0xff] %v1406
  %s1409 = scalar_lea.vmem [#allocation3], 144
  %v1410 = vld [vmem:[%s1409] sm:$0xff]
  %v1411 = vld [vmem:[%s1409 + $0x8] sm:$0xff]
  %v1412 = vld [vmem:[%s1409 + $0x10] sm:$0xff]
  %1413 = vmatprep.subr.mxu0 %v393
  %1414 = vmatpush1.msra.mxu0 %v392
  %1415 = vmatprep.subr.mxu0 %v390
  %1416 = vmatpush1.msra.mxu0 %v389
  %1417 = vmatprep.subr.mxu0 %v387
  %1418 = vmatpush1.msra.mxu0 %v386
  %1419 = vmatprep.subr.mxu0 %v384
  %1420 = vmatpush1.msra.mxu0 %v383
  %1421 = vmatprep.subr.mxu0 %v381
  %1422 = vmatpush1.msra.mxu0 %v380
  %1423 = vmatprep.subr.mxu0 %v378
  %1424 = vmatpush1.msra.mxu0 %v377
  %1425 = vmatprep.subr.mxu0 %v375
  %1426 = vmatpush1.msra.mxu0 %v374
  %1427 = vmatprep.subr.mxu0 %v372
  %1428 = vmatpush1.msra.mxu0 %v371
  %1429 = vmatprep.subr.mxu0 %v369
  %1430 = vmatpush1.msra.mxu0 %v368
  %1431 = vmatprep.subr.mxu0 %v366
  %1432 = vmatpush1.msra.mxu0 %v365
  %1433 = vmatprep.subr.mxu0 %v363
  %1434 = vmatpush1.msra.mxu0 %v362
  %1435 = vmatprep.subr.mxu0 %v360
  %1436 = vmatpush1.msra.mxu0 %v359
  %1437 = vmatprep.subr.mxu0 %v357
  %1438 = vmatpush1.msra.mxu0 %v356
  %1439 = vmatprep.subr.mxu0 %v354
  %1440 = vmatpush1.msra.mxu0 %v353
  %1441 = vmatprep.subr.mxu0 %v351
  %1442 = vmatpush1.msra.mxu0 %v350
  %1443 = vmatprep.subr.mxu0 %v348
  %1444 = vmatpush1.msra.mxu0 %v347
  %1445 = vmatprep.subr.mxu0 0.0
  %1446 = vmatpush2.msra.mxu0 0.0
  %1447 = vmatprep.subr.mxu0 0.0
  %1448 = vmatpush2.msra.mxu0 0.0
  %1449 = vmatprep.subr.mxu0 0.0
  %1450 = vmatpush2.msra.mxu0 0.0
  %1451 = vmatprep.subr.mxu0 0.0
  %1452 = vmatpush2.msra.mxu0 0.0
  %1453 = vmatprep.subr.mxu0 0.0
  %1454 = vmatpush2.msra.mxu0 0.0
  %1455 = vmatprep.subr.mxu0 0.0
  %1456 = vmatpush2.msra.mxu0 0.0
  %1457 = vmatprep.subr.mxu0 0.0
  %1458 = vmatpush2.msra.mxu0 0.0
  %1459 = vmatprep.subr.mxu0 0.0
  %1460 = vmatpush2.msra.mxu0 0.0
  %1461 = vmatprep.subr.mxu0 0.0
  %1462 = vmatpush2.msra.mxu0 0.0
  %1463 = vmatprep.subr.mxu0 0.0
  %1464 = vmatpush2.msra.mxu0 0.0
  %1465 = vmatprep.subr.mxu0 0.0
  %1466 = vmatpush2.msra.mxu0 0.0
  %1467 = vmatprep.subr.mxu0 0.0
  %1468 = vmatpush2.msra.mxu0 0.0
  %1469 = vmatprep.subr.mxu0 0.0
  %1470 = vmatpush2.msra.mxu0 0.0
  %1471 = vmatprep.subr.mxu0 0.0
  %1472 = vmatpush2.msra.mxu0 0.0
  %1473 = vmatprep.subr.mxu0 0.0
  %1474 = vmatpush2.msra.mxu0 0.0
  %1475 = vmatprep.subr.mxu0 0.0
  %1476 = vmatpush2.msra.mxu0 0.0
  %1477 = vmatprep.mubr.f32.mxu0 0.0
  %1478 = vmatmul.mubr.f32.gmra.mxu0 %v1406
  %v1479 = vpop.f32.mrf.mxu0
  %v1480 = vadd.f32 0.0, %v1479
  %v1481 = vpop.f32.mrf.mxu0
  %v1482 = vadd.f32 0.0, %v1481
  %1483 = vdwg.mxu0
  %1484 = vmatprep.subr.mxu0 0.0
  %1485 = vmatpush1.msra.mxu0 %v394
  %1486 = vmatprep.subr.mxu0 0.0
  %1487 = vmatpush1.msra.mxu0 %v391
  %1488 = vmatprep.subr.mxu0 0.0
  %1489 = vmatpush1.msra.mxu0 %v388
  %1490 = vmatprep.subr.mxu0 0.0
  %1491 = vmatpush1.msra.mxu0 %v385
  %1492 = vmatprep.subr.mxu0 0.0
  %1493 = vmatpush1.msra.mxu0 %v382
  %1494 = vmatprep.subr.mxu0 0.0
  %1495 = vmatpush1.msra.mxu0 %v379
  %1496 = vmatprep.subr.mxu0 0.0
  %1497 = vmatpush1.msra.mxu0 %v376
  %1498 = vmatprep.subr.mxu0 0.0
  %1499 = vmatpush1.msra.mxu0 %v373
  %1500 = vmatprep.subr.mxu0 0.0
  %1501 = vmatpush1.msra.mxu0 %v370
  %1502 = vmatprep.subr.mxu0 0.0
  %1503 = vmatpush1.msra.mxu0 %v367
  %1504 = vmatprep.subr.mxu0 0.0
  %1505 = vmatpush1.msra.mxu0 %v364
  %1506 = vmatprep.subr.mxu0 0.0
  %1507 = vmatpush1.msra.mxu0 %v361
  %1508 = vmatprep.subr.mxu0 0.0
  %1509 = vmatpush1.msra.mxu0 %v358
  %1510 = vmatprep.subr.mxu0 0.0
  %1511 = vmatpush1.msra.mxu0 %v355
  %1512 = vmatprep.subr.mxu0 0.0
  %1513 = vmatpush1.msra.mxu0 %v352
  %1514 = vmatprep.subr.mxu0 0.0
  %1515 = vmatpush1.msra.mxu0 %v349
  %1516 = vmatprep.subr.mxu0 0.0
  %1517 = vmatpush2.msra.mxu0 0.0
  %1518 = vmatprep.subr.mxu0 0.0
  %1519 = vmatpush2.msra.mxu0 0.0
  %1520 = vmatprep.subr.mxu0 0.0
  %1521 = vmatpush2.msra.mxu0 0.0
  %1522 = vmatprep.subr.mxu0 0.0
  %1523 = vmatpush2.msra.mxu0 0.0
  %1524 = vmatprep.subr.mxu0 0.0
  %1525 = vmatpush2.msra.mxu0 0.0
  %1526 = vmatprep.subr.mxu0 0.0
  %1527 = vmatpush2.msra.mxu0 0.0
  %1528 = vmatprep.subr.mxu0 0.0
  %1529 = vmatpush2.msra.mxu0 0.0
  %1530 = vmatprep.subr.mxu0 0.0
  %1531 = vmatpush2.msra.mxu0 0.0
  %1532 = vmatprep.subr.mxu0 0.0
  %1533 = vmatpush2.msra.mxu0 0.0
  %1534 = vmatprep.subr.mxu0 0.0
  %1535 = vmatpush2.msra.mxu0 0.0
  %1536 = vmatprep.subr.mxu0 0.0
  %1537 = vmatpush2.msra.mxu0 0.0
  %1538 = vmatprep.subr.mxu0 0.0
  %1539 = vmatpush2.msra.mxu0 0.0
  %1540 = vmatprep.subr.mxu0 0.0
  %1541 = vmatpush2.msra.mxu0 0.0
  %1542 = vmatprep.subr.mxu0 0.0
  %1543 = vmatpush2.msra.mxu0 0.0
  %1544 = vmatprep.subr.mxu0 0.0
  %1545 = vmatpush2.msra.mxu0 0.0
  %1546 = vmatprep.subr.mxu0 0.0
  %1547 = vmatpush2.msra.mxu0 0.0
  %1548 = vmatprep.mubr.f32.mxu0 0.0
  %1549 = vmatmul.mubr.f32.gmra.mxu0 %v1406
  %v1550 = vpop.f32.mrf.mxu0
  %v1551 = vadd.f32 0.0, %v1550
  %v1552 = vpop.f32.mrf.mxu0
  %1553 = vdwg.mxu0
  %v1554 = vadd.f32 %v1410, %v1480
  %v1555 = vxor.u32 %v1554, 2147483648
  %v1556 = vmul.f32 %v1555, 1.442695
  %v1557 = vpow.pop %v1556
  %v1558 = vadd.f32 %v1557, 1.0
  %v1559 = vrcp.pop %v1558
  %v1560 = vmul.f32 1.0, %v1559
  %v1561 = vadd.f32 %v1411, %v1482
  %v1562 = vxor.u32 %v1561, 2147483648
  %v1563 = vmul.f32 %v1562, 1.442695
  %v1564 = vpow.pop %v1563
  %v1565 = vadd.f32 %v1564, 1.0
  %v1566 = vrcp.pop %v1565
  %v1567 = vmul.f32 1.0, %v1566
  %v1568 = vadd.f32 %v1551, %v559
  %v1569 = vmul.f32 %v1560, %v1568
  %v1570 = vadd.f32 %v1412, %v1569
  %v1571 = vtanh.pop %v1570
  %v1572 = vsub.f32 %v1406, %v1571
  %v1573 = vmul.f32 %v1567, %v1572
  %v1574 = vadd.f32 %v1571, %v1573
  %s1575 = scalar_lea.vmem [#allocation4], 48
  %1576 = vst [vmem:[%s1575] sm:$0xff] %v1574
  %s1577 = scalar_lea.vmem [#allocation3], 168
  %v1578 = vld [vmem:[%s1577] sm:$0xff]
  %v1579 = vld [vmem:[%s1577 + $0x8] sm:$0xff]
  %v1580 = vld [vmem:[%s1577 + $0x10] sm:$0xff]
  %1581 = vmatprep.subr.mxu0 %v393
  %1582 = vmatpush1.msra.mxu0 %v392
  %1583 = vmatprep.subr.mxu0 %v390
  %1584 = vmatpush1.msra.mxu0 %v389
  %1585 = vmatprep.subr.mxu0 %v387
  %1586 = vmatpush1.msra.mxu0 %v386
  %1587 = vmatprep.subr.mxu0 %v384
  %1588 = vmatpush1.msra.mxu0 %v383
  %1589 = vmatprep.subr.mxu0 %v381
  %1590 = vmatpush1.msra.mxu0 %v380
  %1591 = vmatprep.subr.mxu0 %v378
  %1592 = vmatpush1.msra.mxu0 %v377
  %1593 = vmatprep.subr.mxu0 %v375
  %1594 = vmatpush1.msra.mxu0 %v374
  %1595 = vmatprep.subr.mxu0 %v372
  %1596 = vmatpush1.msra.mxu0 %v371
  %1597 = vmatprep.subr.mxu0 %v369
  %1598 = vmatpush1.msra.mxu0 %v368
  %1599 = vmatprep.subr.mxu0 %v366
  %1600 = vmatpush1.msra.mxu0 %v365
  %1601 = vmatprep.subr.mxu0 %v363
  %1602 = vmatpush1.msra.mxu0 %v362
  %1603 = vmatprep.subr.mxu0 %v360
  %1604 = vmatpush1.msra.mxu0 %v359
  %1605 = vmatprep.subr.mxu0 %v357
  %1606 = vmatpush1.msra.mxu0 %v356
  %1607 = vmatprep.subr.mxu0 %v354
  %1608 = vmatpush1.msra.mxu0 %v353
  %1609 = vmatprep.subr.mxu0 %v351
  %1610 = vmatpush1.msra.mxu0 %v350
  %1611 = vmatprep.subr.mxu0 %v348
  %1612 = vmatpush1.msra.mxu0 %v347
  %1613 = vmatprep.subr.mxu0 0.0
  %1614 = vmatpush2.msra.mxu0 0.0
  %1615 = vmatprep.subr.mxu0 0.0
  %1616 = vmatpush2.msra.mxu0 0.0
  %1617 = vmatprep.subr.mxu0 0.0
  %1618 = vmatpush2.msra.mxu0 0.0
  %1619 = vmatprep.subr.mxu0 0.0
  %1620 = vmatpush2.msra.mxu0 0.0
  %1621 = vmatprep.subr.mxu0 0.0
  %1622 = vmatpush2.msra.mxu0 0.0
  %1623 = vmatprep.subr.mxu0 0.0
  %1624 = vmatpush2.msra.mxu0 0.0
  %1625 = vmatprep.subr.mxu0 0.0
  %1626 = vmatpush2.msra.mxu0 0.0
  %1627 = vmatprep.subr.mxu0 0.0
  %1628 = vmatpush2.msra.mxu0 0.0
  %1629 = vmatprep.subr.mxu0 0.0
  %1630 = vmatpush2.msra.mxu0 0.0
  %1631 = vmatprep.subr.mxu0 0.0
  %1632 = vmatpush2.msra.mxu0 0.0
  %1633 = vmatprep.subr.mxu0 0.0
  %1634 = vmatpush2.msra.mxu0 0.0
  %1635 = vmatprep.subr.mxu0 0.0
  %1636 = vmatpush2.msra.mxu0 0.0
  %1637 = vmatprep.subr.mxu0 0.0
  %1638 = vmatpush2.msra.mxu0 0.0
  %1639 = vmatprep.subr.mxu0 0.0
  %1640 = vmatpush2.msra.mxu0 0.0
  %1641 = vmatprep.subr.mxu0 0.0
  %1642 = vmatpush2.msra.mxu0 0.0
  %1643 = vmatprep.subr.mxu0 0.0
  %1644 = vmatpush2.msra.mxu0 0.0
  %1645 = vmatprep.mubr.f32.mxu0 0.0
  %1646 = vmatmul.mubr.f32.gmra.mxu0 %v1574
  %v1647 = vpop.f32.mrf.mxu0
  %v1648 = vadd.f32 0.0, %v1647
  %v1649 = vpop.f32.mrf.mxu0
  %v1650 = vadd.f32 0.0, %v1649
  %1651 = vdwg.mxu0
  %1652 = vmatprep.subr.mxu0 0.0
  %1653 = vmatpush1.msra.mxu0 %v394
  %1654 = vmatprep.subr.mxu0 0.0
  %1655 = vmatpush1.msra.mxu0 %v391
  %1656 = vmatprep.subr.mxu0 0.0
  %1657 = vmatpush1.msra.mxu0 %v388
  %1658 = vmatprep.subr.mxu0 0.0
  %1659 = vmatpush1.msra.mxu0 %v385
  %1660 = vmatprep.subr.mxu0 0.0
  %1661 = vmatpush1.msra.mxu0 %v382
  %1662 = vmatprep.subr.mxu0 0.0
  %1663 = vmatpush1.msra.mxu0 %v379
  %1664 = vmatprep.subr.mxu0 0.0
  %1665 = vmatpush1.msra.mxu0 %v376
  %1666 = vmatprep.subr.mxu0 0.0
  %1667 = vmatpush1.msra.mxu0 %v373
  %1668 = vmatprep.subr.mxu0 0.0
  %1669 = vmatpush1.msra.mxu0 %v370
  %1670 = vmatprep.subr.mxu0 0.0
  %1671 = vmatpush1.msra.mxu0 %v367
  %1672 = vmatprep.subr.mxu0 0.0
  %1673 = vmatpush1.msra.mxu0 %v364
  %1674 = vmatprep.subr.mxu0 0.0
  %1675 = vmatpush1.msra.mxu0 %v361
  %1676 = vmatprep.subr.mxu0 0.0
  %1677 = vmatpush1.msra.mxu0 %v358
  %1678 = vmatprep.subr.mxu0 0.0
  %1679 = vmatpush1.msra.mxu0 %v355
  %1680 = vmatprep.subr.mxu0 0.0
  %1681 = vmatpush1.msra.mxu0 %v352
  %1682 = vmatprep.subr.mxu0 0.0
  %1683 = vmatpush1.msra.mxu0 %v349
  %1684 = vmatprep.subr.mxu0 0.0
  %1685 = vmatpush2.msra.mxu0 0.0
  %1686 = vmatprep.subr.mxu0 0.0
  %1687 = vmatpush2.msra.mxu0 0.0
  %1688 = vmatprep.subr.mxu0 0.0
  %1689 = vmatpush2.msra.mxu0 0.0
  %1690 = vmatprep.subr.mxu0 0.0
  %1691 = vmatpush2.msra.mxu0 0.0
  %1692 = vmatprep.subr.mxu0 0.0
  %1693 = vmatpush2.msra.mxu0 0.0
  %1694 = vmatprep.subr.mxu0 0.0
  %1695 = vmatpush2.msra.mxu0 0.0
  %1696 = vmatprep.subr.mxu0 0.0
  %1697 = vmatpush2.msra.mxu0 0.0
  %1698 = vmatprep.subr.mxu0 0.0
  %1699 = vmatpush2.msra.mxu0 0.0
  %1700 = vmatprep.subr.mxu0 0.0
  %1701 = vmatpush2.msra.mxu0 0.0
  %1702 = vmatprep.subr.mxu0 0.0
  %1703 = vmatpush2.msra.mxu0 0.0
  %1704 = vmatprep.subr.mxu0 0.0
  %1705 = vmatpush2.msra.mxu0 0.0
  %1706 = vmatprep.subr.mxu0 0.0
  %1707 = vmatpush2.msra.mxu0 0.0
  %1708 = vmatprep.subr.mxu0 0.0
  %1709 = vmatpush2.msra.mxu0 0.0
  %1710 = vmatprep.subr.mxu0 0.0
  %1711 = vmatpush2.msra.mxu0 0.0
  %1712 = vmatprep.subr.mxu0 0.0
  %1713 = vmatpush2.msra.mxu0 0.0
  %1714 = vmatprep.subr.mxu0 0.0
  %1715 = vmatpush2.msra.mxu0 0.0
  %1716 = vmatprep.mubr.f32.mxu0 0.0
  %1717 = vmatmul.mubr.f32.gmra.mxu0 %v1574
  %v1718 = vpop.f32.mrf.mxu0
  %v1719 = vadd.f32 0.0, %v1718
  %v1720 = vpop.f32.mrf.mxu0
  %1721 = vdwg.mxu0
  %v1722 = vadd.f32 %v1578, %v1648
  %v1723 = vxor.u32 %v1722, 2147483648
  %v1724 = vmul.f32 %v1723, 1.442695
  %v1725 = vpow.pop %v1724
  %v1726 = vadd.f32 %v1725, 1.0
  %v1727 = vrcp.pop %v1726
  %v1728 = vmul.f32 1.0, %v1727
  %v1729 = vadd.f32 %v1579, %v1650
  %v1730 = vxor.u32 %v1729, 2147483648
  %v1731 = vmul.f32 %v1730, 1.442695
  %v1732 = vpow.pop %v1731
  %v1733 = vadd.f32 %v1732, 1.0
  %v1734 = vrcp.pop %v1733
  %v1735 = vmul.f32 1.0, %v1734
  %v1736 = vadd.f32 %v1719, %v559
  %v1737 = vmul.f32 %v1728, %v1736
  %v1738 = vadd.f32 %v1580, %v1737
  %v1739 = vtanh.pop %v1738
  %v1740 = vsub.f32 %v1574, %v1739
  %v1741 = vmul.f32 %v1735, %v1740
  %v1742 = vadd.f32 %v1739, %v1741
  %s1743 = scalar_lea.vmem [#allocation4], 56
  %1744 = vst [vmem:[%s1743] sm:$0xff] %v1742
  %1745 = vst [vmem:[#allocation2] sm:$0xff] %v1742
  %v1746 = vld [vmem:[#allocation4] sm:$0xff]
  %v1747 = vld [vmem:[#allocation4 + $0x8] sm:$0xff]
  %v1748 = vld [vmem:[#allocation4 + $0x10] sm:$0xff]
  %v1749 = vld [vmem:[#allocation4 + $0x18] sm:$0xff]
  %v1750 = vld [vmem:[#allocation4 + $0x20] sm:$0xff]
  %v1751 = vld [vmem:[#allocation4 + $0x28] sm:$0xff]
  %v1752 = vld [vmem:[#allocation4 + $0x30] sm:$0xff]
  %v1753 = vld [vmem:[#allocation4 + $0x38] sm:$0xff]
  %v1754 = vld [vmem:[%s5] sm:$0xff]
  %v1755 = vld [vmem:[%s5 + $0x8] sm:$0xff]
  %v1756 = vld [vmem:[%s5 + $0x10] sm:$0xff]
  %v1757 = vld [vmem:[%s5 + $0x18] sm:$0xff]
  %v1758 = vld [vmem:[%s5 + $0x20] sm:$0xff]
  %v1759 = vld [vmem:[%s5 + $0x28] sm:$0xff]
  %v1760 = vld [vmem:[%s5 + $0x30] sm:$0xff]
  %v1761 = vld [vmem:[%s5 + $0x38] sm:$0xff]
  %v1762 = vld [vmem:[%s5 + $0x40] sm:$0xff]
  %v1763 = vld [vmem:[%s5 + $0x48] sm:$0xff]
  %v1764 = vld [vmem:[%s5 + $0x50] sm:$0xff]
  %v1765 = vld [vmem:[%s5 + $0x58] sm:$0xff]
  %v1766 = vld [vmem:[%s5 + $0x60] sm:$0xff]
  %v1767 = vld [vmem:[%s5 + $0x68] sm:$0xff]
  %v1768 = vld [vmem:[%s5 + $0x70] sm:$0xff]
  %v1769 = vld [vmem:[%s5 + $0x78] sm:$0xff]
  %v1770 = vld [vmem:[%s6] sm:$0x1]
  %v1772 = vlaneseq
  %v1773 = vshrl.u32 %v1772, 7
  %v1774 = vsub.s32 0, %v1773
  %v1775 = vrot.slane %v1770, %v1774
  %1777 = vmatprep.subr.mxu0 0.0
  %1778 = vmatpush1.msra.mxu0 %v1769
  %1779 = vmatprep.subr.mxu0 0.0
  %1780 = vmatpush1.msra.mxu0 %v1768
  %1781 = vmatprep.subr.mxu0 0.0
  %1782 = vmatpush1.msra.mxu0 %v1767
  %1783 = vmatprep.subr.mxu0 0.0
  %1784 = vmatpush1.msra.mxu0 %v1766
  %1785 = vmatprep.subr.mxu0 0.0
  %1786 = vmatpush1.msra.mxu0 %v1765
  %1787 = vmatprep.subr.mxu0 0.0
  %1788 = vmatpush1.msra.mxu0 %v1764
  %1789 = vmatprep.subr.mxu0 0.0
  %1790 = vmatpush1.msra.mxu0 %v1763
  %1791 = vmatprep.subr.mxu0 0.0
  %1792 = vmatpush1.msra.mxu0 %v1762
  %1793 = vmatprep.subr.mxu0 0.0
  %1794 = vmatpush1.msra.mxu0 %v1761
  %1795 = vmatprep.subr.mxu0 0.0
  %1796 = vmatpush1.msra.mxu0 %v1760
  %1797 = vmatprep.subr.mxu0 0.0
  %1798 = vmatpush1.msra.mxu0 %v1759
  %1799 = vmatprep.subr.mxu0 0.0
  %1800 = vmatpush1.msra.mxu0 %v1758
  %1801 = vmatprep.subr.mxu0 0.0
  %1802 = vmatpush1.msra.mxu0 %v1757
  %1803 = vmatprep.subr.mxu0 0.0
  %1804 = vmatpush1.msra.mxu0 %v1756
  %1805 = vmatprep.subr.mxu0 0.0
  %1806 = vmatpush1.msra.mxu0 %v1755
  %1807 = vmatprep.subr.mxu0 0.0
  %1808 = vmatpush1.msra.mxu0 %v1754
  %1809 = vmatprep.subr.mxu0 0.0
  %1810 = vmatpush2.msra.mxu0 0.0
  %1811 = vmatprep.subr.mxu0 0.0
  %1812 = vmatpush2.msra.mxu0 0.0
  %1813 = vmatprep.subr.mxu0 0.0
  %1814 = vmatpush2.msra.mxu0 0.0
  %1815 = vmatprep.subr.mxu0 0.0
  %1816 = vmatpush2.msra.mxu0 0.0
  %1817 = vmatprep.subr.mxu0 0.0
  %1818 = vmatpush2.msra.mxu0 0.0
  %1819 = vmatprep.subr.mxu0 0.0
  %1820 = vmatpush2.msra.mxu0 0.0
  %1821 = vmatprep.subr.mxu0 0.0
  %1822 = vmatpush2.msra.mxu0 0.0
  %1823 = vmatprep.subr.mxu0 0.0
  %1824 = vmatpush2.msra.mxu0 0.0
  %1825 = vmatprep.subr.mxu0 0.0
  %1826 = vmatpush2.msra.mxu0 0.0
  %1827 = vmatprep.subr.mxu0 0.0
  %1828 = vmatpush2.msra.mxu0 0.0
  %1829 = vmatprep.subr.mxu0 0.0
  %1830 = vmatpush2.msra.mxu0 0.0
  %1831 = vmatprep.subr.mxu0 0.0
  %1832 = vmatpush2.msra.mxu0 0.0
  %1833 = vmatprep.subr.mxu0 0.0
  %1834 = vmatpush2.msra.mxu0 0.0
  %1835 = vmatprep.subr.mxu0 0.0
  %1836 = vmatpush2.msra.mxu0 0.0
  %1837 = vmatprep.subr.mxu0 0.0
  %1838 = vmatpush2.msra.mxu0 0.0
  %1839 = vmatprep.subr.mxu0 0.0
  %1840 = vmatpush2.msra.mxu0 0.0
  %1841 = vmatprep.mubr.f32.mxu0 0.0
  %1842 = vmatmul.mubr.f32.gmra.mxu0 %v1746
  %v1843 = vpop.f32.mrf.mxu0
  %v1844 = vadd.f32 %v1775, %v1843
  %v1845 = vpop.f32.mrf.mxu0
  %1846 = vmatprep.mubr.f32.mxu0 0.0
  %1847 = vmatmul.mubr.f32.gmra.mxu0 %v1747
  %v1848 = vpop.f32.mrf.mxu0
  %v1849 = vadd.f32 %v1775, %v1848
  %v1850 = vpop.f32.mrf.mxu0
  %1851 = vmatprep.mubr.f32.mxu0 0.0
  %1852 = vmatmul.mubr.f32.gmra.mxu0 %v1748
  %v1853 = vpop.f32.mrf.mxu0
  %v1854 = vadd.f32 %v1775, %v1853
  %v1855 = vpop.f32.mrf.mxu0
  %1856 = vmatprep.mubr.f32.mxu0 0.0
  %1857 = vmatmul.mubr.f32.gmra.mxu0 %v1749
  %v1858 = vpop.f32.mrf.mxu0
  %v1859 = vadd.f32 %v1775, %v1858
  %v1860 = vpop.f32.mrf.mxu0
  %1861 = vmatprep.mubr.f32.mxu0 0.0
  %1862 = vmatmul.mubr.f32.gmra.mxu0 %v1750
  %v1863 = vpop.f32.mrf.mxu0
  %v1864 = vadd.f32 %v1775, %v1863
  %v1865 = vpop.f32.mrf.mxu0
  %1866 = vmatprep.mubr.f32.mxu0 0.0
  %1867 = vmatmul.mubr.f32.gmra.mxu0 %v1751
  %v1868 = vpop.f32.mrf.mxu0
  %v1869 = vadd.f32 %v1775, %v1868
  %v1870 = vpop.f32.mrf.mxu0
  %1871 = vmatprep.mubr.f32.mxu0 0.0
  %1872 = vmatmul.mubr.f32.gmra.mxu0 %v1752
  %v1873 = vpop.f32.mrf.mxu0
  %v1874 = vadd.f32 %v1775, %v1873
  %v1875 = vpop.f32.mrf.mxu0
  %1876 = vmatprep.mubr.f32.mxu0 0.0
  %1877 = vmatmul.mubr.f32.gmra.mxu0 %v1753
  %v1878 = vpop.f32.mrf.mxu0
  %v1879 = vadd.f32 %v1775, %v1878
  %v1880 = vpop.f32.mrf.mxu0
  %1881 = vdwg.mxu0
  %1882 = vst [vmem:[%s7] sm:$0xff] %v1844
  %1883 = vst [vmem:[%s7 + $0x8] sm:$0xff] %v1849
  %1884 = vst [vmem:[%s7 + $0x10] sm:$0xff] %v1854
  %1885 = vst [vmem:[%s7 + $0x18] sm:$0xff] %v1859
  %1886 = vst [vmem:[%s7 + $0x20] sm:$0xff] %v1864
  %1887 = vst [vmem:[%s7 + $0x28] sm:$0xff] %v1869
  %1888 = vst [vmem:[%s7 + $0x30] sm:$0xff] %v1874
  %1889 = vst [vmem:[%s7 + $0x38] sm:$0xff] %v1879
  // Predicated region
  $region34: #{phase_gru_forward.1} parent=0 // pred_check
    _
  $region35: #{phase_gru_forward.1} parent=0 // pred_check_branch
    %1891 = sbr.rel (0) target = $region37
  $region36: #{phase_gru_forward.1} parent=0 // pred_region
    _
  $region37: #{phase_gru_forward.1} parent=0 // pred_fallthru
    _
  // Predicated region
  $region38: #{phase_gru_forward.1} parent=0 // pred_check
    _
  $region39: #{phase_gru_forward.1} parent=0 // pred_check_branch
    %1893 = sbr.rel (0) target = $region41
  $region40: #{phase_gru_forward.1} parent=0 // pred_region
    _
  $region41: #{phase_gru_forward.1} parent=0 // pred_fallthru
    _

</llo_original>
